<compile_context>
chip_gen: v7x
topology: tpu7x:2x2x1
jax: 0.10.0
libtpu: 0.0.40
codegen_flags: <defaults>
</compile_context>

<pallas_src>
import functools

import jax
import jax.numpy as jnp
from jax.experimental import pallas as pl
from jax.experimental.pallas import tpu as pltpu


# ---------------------------------------------------------------------------
# Pallas kernel: out = act(A @ W + b)
#   A : (tm, K) bf16,  W : (K, N) bf16 (resident across the M grid),
#   f32 MXU accumulation, f32 bias + activation epilogue (v5e-safe),
#   store in out dtype (bf16 between layers, f32 for the final layer).
# ---------------------------------------------------------------------------
def _matmul_bias_act_kernel(a_ref, w_ref, b_ref, o_ref, *, act):
    y = jnp.dot(a_ref[...], w_ref[...], preferred_element_type=jnp.float32)
    y = y + b_ref[...]
    if act == "relu":
        y = jnp.maximum(y, 0.0)
    elif act == "sigmoid":
        y = jax.nn.sigmoid(y)
    o_ref[...] = y.astype(o_ref.dtype)


TM_MAX = 512  # Row-tile cap (multiple of 8).  Per-block working set stays
              # ~1 MB at any batch size; at B=2 the step counts per layer are
              # 1 / 2 / 5 (low grid overhead on single-TC v5e/v6e), and at
              # batch >= 16 there are plenty of "parallel" blocks for v7x.


def matmul_bias_act(a, w, b, act, out_dtype):
    """act(a @ w + b); a:(M,K) bf16, w:(K,N) bf16, b:(N,) f32 -> (M,N) out_dtype."""
    M, K = a.shape
    N = w.shape[1]
    # Capped row tile + cdiv grid: block count grows with M, block size doesn't.
    n_blocks = pl.cdiv(M, TM_MAX)
    rows = -(-M // n_blocks)            # rows per block (balanced)
    tm = -(-rows // 8) * 8              # round up to sublane multiple
    g = pl.cdiv(M, tm)
    m_pad = g * tm
    if m_pad != M:
        a = jnp.pad(a, ((0, m_pad - M), (0, 0)))
    cost = pl.CostEstimate(
        flops=2 * m_pad * K * N,
        transcendentals=m_pad * N if act == "sigmoid" else 0,
        bytes_accessed=(m_pad * K * a.dtype.itemsize
                        + K * N * w.dtype.itemsize
                        + N * 4
                        + m_pad * N * jnp.dtype(out_dtype).itemsize),
    )
    out = pl.pallas_call(
        functools.partial(_matmul_bias_act_kernel, act=act),
        out_shape=jax.ShapeDtypeStruct((m_pad, N), out_dtype),
        grid=(g,),
        in_specs=[
            pl.BlockSpec((tm, K), lambda i: (i, 0)),
            pl.BlockSpec((K, N), lambda i: (0, 0)),   # constant index: resident
            pl.BlockSpec((1, N), lambda i: (0, 0)),   # bias: resident
        ],
        out_specs=pl.BlockSpec((tm, N), lambda i: (i, 0)),
        compiler_params=pltpu.CompilerParams(dimension_semantics=("parallel",)),
        cost_estimate=cost,
    )(a, w, b.reshape(1, N))
    return out[:M]


# ---------------------------------------------------------------------------
# Phase-decomposed ConvTranspose2d(k=4, s=2, p=1)
# ---------------------------------------------------------------------------
def _phase_patches(x_nhwc):
    """2x2 windows of the 1-padded input: (B,H,W,C) -> (B*(H+1)*(W+1), 4*C).

    K ordering of a patch row is (dy, dx, c).  Runs in bf16 (half the glue
    traffic).
    # TODO(synk): fold this gather into the pallas_call (whole padded
    # activation as a resident VMEM ref); not done here because the unaligned
    # in-kernel slices/reshapes (H+1, W+1 not multiples of 8) risk Mosaic
    # relayout / lowering issues.
    """
    B, H, W, C = x_nhwc.shape
    xp = jnp.pad(x_nhwc, ((0, 0), (1, 1), (1, 1), (0, 0)))
    cols = [xp[:, dy:dy + H + 1, dx:dx + W + 1, :]
            for dy in range(2) for dx in range(2)]
    patches = jnp.concatenate(cols, axis=-1)            # (B, H+1, W+1, 4C)
    return patches.reshape(B * (H + 1) * (W + 1), 4 * C)


def _depth_to_space_phases(y, B, H, W, cout):
    """Phase-major y: (B, H+1, W+1, 4*cout) -> (B, 2H, 2W, cout).

    With the phase-major weight packing below, the full 2(H+1) x 2(W+1)
    interleave is a pure transpose + reshape; the valid output is the
    [1 : 2H+1, 1 : 2W+1] crop.  No stride-2 scatters, no zero init.
    """
    y = y.reshape(B, H + 1, W + 1, 2, 2, cout)
    full = y.transpose(0, 1, 3, 2, 4, 5).reshape(B, 2 * H + 2, 2 * W + 2, cout)
    return full[:, 1:2 * H + 1, 1:2 * W + 1, :]


def conv_transpose_phase(x_nhwc, w_stk, b_stk, act, cout, out_dtype):
    """Transposed conv via phase decomposition; the matmul runs in Pallas."""
    B, H, W, _ = x_nhwc.shape
    patches = _phase_patches(x_nhwc)                          # (M, 4*Cin) bf16
    y = matmul_bias_act(patches, w_stk, b_stk, act, out_dtype)  # Pallas hot path
    n_real = 4 * cout
    y = y[:, :n_real].reshape(B, H + 1, W + 1, n_real)        # drop N padding
    return _depth_to_space_phases(y, B, H, W, cout)


# ---------------------------------------------------------------------------
# One-time weight repacking (outside the jitted forward)
# ---------------------------------------------------------------------------
def _stack_phase_weights(w_pt, b, n_pad=None):
    """w_pt: PyTorch ConvTranspose2d weight (Cin, Cout, 4, 4) -> bf16 (4*Cin, 4*Cout).

    Row order (dy, dx, c) matches _phase_patches.  Column (phase) order
    (py, px, d) is chosen so that window position r, phase (py, px) lands at
    full-grid output (2r+py, 2s+px); tap mapping k = 2 + phase - 2*offset.
    This makes depth-to-space a single transpose+reshape+crop."""
    cin, cout = w_pt.shape[0], w_pt.shape[1]
    w_stk = jnp.zeros((2, 2, cin, 2, 2, cout), jnp.float32)
    for dy in range(2):
        for dx in range(2):
            for py in range(2):
                for px in range(2):
                    w_stk = w_stk.at[dy, dx, :, py, px, :].set(
                        w_pt[:, :, 2 + py - 2 * dy, 2 + px - 2 * dx])
    w_stk = w_stk.reshape(4 * cin, 4 * cout)
    b_stk = jnp.tile(b, 4).astype(jnp.float32)
    if n_pad is not None and n_pad > 4 * cout:            # lane-dense output N
        w_stk = jnp.pad(w_stk, ((0, 0), (0, n_pad - 4 * cout)))
        b_stk = jnp.pad(b_stk, ((0, n_pad - 4 * cout),))
    return w_stk.astype(jnp.bfloat16), b_stk


def prepare_params(raw):
    latent = raw["fc_w"].shape[0]
    # Permute fc columns from PyTorch (c, h, w) flat order to NHWC (h, w, c)
    # so the fc output reshapes directly to (B, 8, 8, 64) with no transpose.
    fc_w = raw["fc_w"].reshape(latent, 64, 8, 8).transpose(0, 2, 3, 1)
    fc_w = fc_w.reshape(latent, 64 * 8 * 8)
    fc_b = raw["fc_b"].reshape(64, 8, 8).transpose(1, 2, 0).reshape(-1)
    w1, b1 = _stack_phase_weights(raw["w1"], raw["b1"])             # (256, 256)
    w2, b2 = _stack_phase_weights(raw["w2"], raw["b2"])             # (256, 128)
    w3, b3 = _stack_phase_weights(raw["w3"], raw["b3"], n_pad=128)  # (128, 128)
    return {"fc_w": fc_w, "fc_b": fc_b,
            "w1": w1, "b1": b1, "w2": w2, "b2": b2, "w3": w3, "b3": b3}


# ---------------------------------------------------------------------------
# Decoder forward
# ---------------------------------------------------------------------------
def decoder_forward(z, p):
    B = z.shape[0]
    # fc + relu: M = batch underfills the MXU; a pallas_call's overhead exceeds
    # the work here, so use XLA's native dot.  Cast to bf16 for the data path.
    x = jnp.maximum(z @ p["fc_w"] + p["fc_b"], 0.0)
    x = x.reshape(B, 8, 8, 64).astype(jnp.bfloat16)
    x = conv_transpose_phase(x, p["w1"], p["b1"], "relu", 64, jnp.bfloat16)    # (B,16,16,64)
    x = conv_transpose_phase(x, p["w2"], p["b2"], "relu", 32, jnp.bfloat16)    # (B,32,32,32)
    x = conv_transpose_phase(x, p["w3"], p["b3"], "sigmoid", 3, jnp.float32)   # (B,64,64,3)
    return x.transpose(0, 3, 1, 2)                                             # NCHW


# ---------------------------------------------------------------------------
# Pure-JAX reference (direct transposed-conv definition) for verification
# ---------------------------------------------------------------------------
def _conv_transpose_ref(x_nhwc, w_pt, b):
    B, H, W, _ = x_nhwc.shape
    Cout = w_pt.shape[1]
    out_full = jnp.zeros((B, 2 * H + 2, 2 * W + 2, Cout), jnp.float32)
    for ky in range(4):
        for kx in range(4):
            contrib = jnp.einsum("bhwc,cd->bhwd", x_nhwc, w_pt[:, :, ky, kx])
            out_full = out_full.at[:, ky:ky + 2 * H:2, kx:kx + 2 * W:2, :].add(contrib)
    return out_full[:, 1:2 * H + 1, 1:2 * W + 1, :] + b


def decoder_forward_ref(z, raw):
    B = z.shape[0]
    x = jnp.maximum(z @ raw["fc_w"] + raw["fc_b"], 0.0)
    x = x.reshape(B, 64, 8, 8).transpose(0, 2, 3, 1)
    x = jnp.maximum(_conv_transpose_ref(x, raw["w1"], raw["b1"]), 0.0)
    x = jnp.maximum(_conv_transpose_ref(x, raw["w2"], raw["b2"]), 0.0)
    x = jax.nn.sigmoid(_conv_transpose_ref(x, raw["w3"], raw["b3"]))
    return x.transpose(0, 3, 1, 2)


# ---------------------------------------------------------------------------
if __name__ == "__main__":
    latent_dim = 128
    out_channels = 3
    batch = 2

    key = jax.random.PRNGKey(0)
    ks = jax.random.split(key, 9)
    s = 0.05  # small deterministic init scale
    raw_params = {
        "fc_w": jax.random.normal(ks[0], (latent_dim, 64 * 8 * 8), jnp.float32) * s,
        "fc_b": jax.random.normal(ks[1], (64 * 8 * 8,), jnp.float32) * s,
        "w1": jax.random.normal(ks[2], (64, 64, 4, 4), jnp.float32) * s,
        "b1": jax.random.normal(ks[3], (64,), jnp.float32) * s,
        "w2": jax.random.normal(ks[4], (64, 32, 4, 4), jnp.float32) * s,
        "b2": jax.random.normal(ks[5], (32,), jnp.float32) * s,
        "w3": jax.random.normal(ks[6], (32, out_channels, 4, 4), jnp.float32) * s,
        "b3": jax.random.normal(ks[7], (out_channels,), jnp.float32) * s,
    }
    z = jax.random.normal(ks[8], (batch, latent_dim), jnp.float32)

    params = prepare_params(raw_params)            # one-time weight repacking

    out = jax.jit(decoder_forward)(z, params)
    out = jax.block_until_ready(out)
    assert out.shape == (batch, out_channels, 64, 64), out.shape

    # Tolerance reflects DEFAULT MXU precision (bf16 passes); the bf16 data
    # path adds no extra matmul error since DEFAULT already rounds MXU inputs
    # to bf16.
    ref = decoder_forward_ref(z, raw_params)
    err = float(jnp.abs(out - ref).max())
    assert jnp.allclose(out, ref, atol=3e-3, rtol=3e-3), err

    print("KERNEL_OK")
</pallas_src>

<mosaic_0001>
module attributes {stable_mosaic.version = 11 : i64} {
  func.func @_matmul_bias_act_kernel(%arg0: i32, %arg1: memref<168x256xbf16, #tpu.memory_space<vmem>>, %arg2: memref<256x256xbf16, #tpu.memory_space<vmem>>, %arg3: memref<1x256xf32, #tpu.memory_space<vmem>>, %arg4: memref<168x256xbf16, #tpu.memory_space<vmem>>) attributes {dimension_semantics = [#tpu.dimension_semantics<parallel>], iteration_bounds = array<i64: 1>, scalar_prefetch = 0 : i64, scratch_operands = 0 : i64, tpu.core_type = #tpu.core_type<tc>, window_params = [{transform_indices = @transform_0, window_bounds = array<i64: 168, 256>}, {pipeline_mode = #tpu.pipeline_mode<synchronous>, transform_indices = @transform_1, window_bounds = array<i64: 256, 256>}, {pipeline_mode = #tpu.pipeline_mode<synchronous>, transform_indices = @transform_2, window_bounds = array<i64: 1, 256>}, {transform_indices = @transform_3, window_bounds = array<i64: 168, 256>}]} {
    %c0 = arith.constant 0 : index
    %c0_0 = arith.constant 0 : index
    %0 = vector.load %arg1[%c0, %c0_0] : memref<168x256xbf16, #tpu.memory_space<vmem>>, vector<168x256xbf16>
    %c0_1 = arith.constant 0 : index
    %c0_2 = arith.constant 0 : index
    %1 = vector.load %arg2[%c0_1, %c0_2] : memref<256x256xbf16, #tpu.memory_space<vmem>>, vector<256x256xbf16>
    %cst = arith.constant dense<0.000000e+00> : vector<168x256xf32>
    %2 = tpu.matmul %0, %1, %cst {dimension_numbers = #tpu.dot_dimension_numbers<[1], [0], [0], [1], [0, 0, 1, 1], [], []>} : vector<168x256xbf16>, vector<256x256xbf16>, vector<168x256xf32> -> vector<168x256xf32>
    %c0_3 = arith.constant 0 : index
    %c0_4 = arith.constant 0 : index
    %3 = vector.load %arg3[%c0_3, %c0_4] : memref<1x256xf32, #tpu.memory_space<vmem>>, vector<1x256xf32>
    %4 = vector.broadcast %3 : vector<1x256xf32> to vector<168x256xf32>
    %5 = arith.addf %2, %4 : vector<168x256xf32>
    %cst_5 = arith.constant 0.000000e+00 : f32
    %6 = vector.broadcast %cst_5 : f32 to vector<168x256xf32>
    %7 = arith.maximumf %5, %6 : vector<168x256xf32>
    %8 = arith.truncf %7 : vector<168x256xf32> to vector<168x256xbf16>
    %c0_6 = arith.constant 0 : index
    %c0_7 = arith.constant 0 : index
    %9 = vector.load %arg4[%c0_6, %c0_7] : memref<168x256xbf16, #tpu.memory_space<vmem>>, vector<168x256xbf16>
    tpu.vector_store %arg4[%c0_6, %c0_7], %8 {strides = array<i32>} : memref<168x256xbf16, #tpu.memory_space<vmem>>, vector<168x256xbf16>,
    return
  }
  func.func @transform_0(%arg0: i32) -> (i32, i32) {
    %c0_i32 = arith.constant 0 : i32
    %c0_i32_0 = arith.constant 0 : i32
    return %arg0, %c0_i32 : i32, i32
  }
  func.func @transform_1(%arg0: i32) -> (i32, i32) {
    %c0_i32 = arith.constant 0 : i32
    %c0_i32_0 = arith.constant 0 : i32
    %c0_i32_1 = arith.constant 0 : i32
    return %c0_i32, %c0_i32_0 : i32, i32
  }
  func.func @transform_2(%arg0: i32) -> (i32, i32) {
    %c0_i32 = arith.constant 0 : i32
    %c0_i32_0 = arith.constant 0 : i32
    %c0_i32_1 = arith.constant 0 : i32
    return %c0_i32, %c0_i32_0 : i32, i32
  }
  func.func @transform_3(%arg0: i32) -> (i32, i32) {
    %c0_i32 = arith.constant 0 : i32
    %c0_i32_0 = arith.constant 0 : i32
    return %arg0, %c0_i32 : i32, i32
  }
}

module attributes {stable_mosaic.version = 11 : i64} {
  func.func @_matmul_bias_act_kernel(%arg0: i32, %arg1: memref<296x256xbf16, #tpu.memory_space<vmem>>, %arg2: memref<256x128xbf16, #tpu.memory_space<vmem>>, %arg3: memref<1x128xf32, #tpu.memory_space<vmem>>, %arg4: memref<296x128xbf16, #tpu.memory_space<vmem>>) attributes {dimension_semantics = [#tpu.dimension_semantics<parallel>], iteration_bounds = array<i64: 2>, scalar_prefetch = 0 : i64, scratch_operands = 0 : i64, tpu.core_type = #tpu.core_type<tc>, window_params = [{transform_indices = @transform_0, window_bounds = array<i64: 296, 256>}, {pipeline_mode = #tpu.pipeline_mode<synchronous>, transform_indices = @transform_1, window_bounds = array<i64: 256, 128>}, {pipeline_mode = #tpu.pipeline_mode<synchronous>, transform_indices = @transform_2, window_bounds = array<i64: 1, 128>}, {transform_indices = @transform_3, window_bounds = array<i64: 296, 128>}]} {
    %c0 = arith.constant 0 : index
    %c0_0 = arith.constant 0 : index
    %0 = vector.load %arg1[%c0, %c0_0] : memref<296x256xbf16, #tpu.memory_space<vmem>>, vector<296x256xbf16>
    %c0_1 = arith.constant 0 : index
    %c0_2 = arith.constant 0 : index
    %1 = vector.load %arg2[%c0_1, %c0_2] : memref<256x128xbf16, #tpu.memory_space<vmem>>, vector<256x128xbf16>
    %cst = arith.constant dense<0.000000e+00> : vector<296x128xf32>
    %2 = tpu.matmul %0, %1, %cst {dimension_numbers = #tpu.dot_dimension_numbers<[1], [0], [0], [1], [0, 0, 1, 1], [], []>} : vector<296x256xbf16>, vector<256x128xbf16>, vector<296x128xf32> -> vector<296x128xf32>
    %c0_3 = arith.constant 0 : index
    %c0_4 = arith.constant 0 : index
    %3 = vector.load %arg3[%c0_3, %c0_4] : memref<1x128xf32, #tpu.memory_space<vmem>>, vector<1x128xf32>
    %4 = vector.broadcast %3 : vector<1x128xf32> to vector<296x128xf32>
    %5 = arith.addf %2, %4 : vector<296x128xf32>
    %cst_5 = arith.constant 0.000000e+00 : f32
    %6 = vector.broadcast %cst_5 : f32 to vector<296x128xf32>
    %7 = arith.maximumf %5, %6 : vector<296x128xf32>
    %8 = arith.truncf %7 : vector<296x128xf32> to vector<296x128xbf16>
    %c0_6 = arith.constant 0 : index
    %c0_7 = arith.constant 0 : index
    %9 = vector.load %arg4[%c0_6, %c0_7] : memref<296x128xbf16, #tpu.memory_space<vmem>>, vector<296x128xbf16>
    tpu.vector_store %arg4[%c0_6, %c0_7], %8 {strides = array<i32>} : memref<296x128xbf16, #tpu.memory_space<vmem>>, vector<296x128xbf16>,
    return
  }
  func.func @transform_0(%arg0: i32) -> (i32, i32) {
    %c0_i32 = arith.constant 0 : i32
    %c0_i32_0 = arith.constant 0 : i32
    return %arg0, %c0_i32 : i32, i32
  }
  func.func @transform_1(%arg0: i32) -> (i32, i32) {
    %c0_i32 = arith.constant 0 : i32
    %c0_i32_0 = arith.constant 0 : i32
    %c0_i32_1 = arith.constant 0 : i32
    return %c0_i32, %c0_i32_0 : i32, i32
  }
  func.func @transform_2(%arg0: i32) -> (i32, i32) {
    %c0_i32 = arith.constant 0 : i32
    %c0_i32_0 = arith.constant 0 : i32
    %c0_i32_1 = arith.constant 0 : i32
    return %c0_i32, %c0_i32_0 : i32, i32
  }
  func.func @transform_3(%arg0: i32) -> (i32, i32) {
    %c0_i32 = arith.constant 0 : i32
    %c0_i32_0 = arith.constant 0 : i32
    return %arg0, %c0_i32 : i32, i32
  }
}

module attributes {stable_mosaic.version = 11 : i64} {
  func.func @_matmul_bias_act_kernel(%arg0: i32, %arg1: memref<440x128xbf16, #tpu.memory_space<vmem>>, %arg2: memref<128x128xbf16, #tpu.memory_space<vmem>>, %arg3: memref<1x128xf32, #tpu.memory_space<vmem>>, %arg4: memref<440x128xf32, #tpu.memory_space<vmem>>) attributes {dimension_semantics = [#tpu.dimension_semantics<parallel>], iteration_bounds = array<i64: 5>, scalar_prefetch = 0 : i64, scratch_operands = 0 : i64, tpu.core_type = #tpu.core_type<tc>, window_params = [{transform_indices = @transform_0, window_bounds = array<i64: 440, 128>}, {pipeline_mode = #tpu.pipeline_mode<synchronous>, transform_indices = @transform_1, window_bounds = array<i64: 128, 128>}, {pipeline_mode = #tpu.pipeline_mode<synchronous>, transform_indices = @transform_2, window_bounds = array<i64: 1, 128>}, {transform_indices = @transform_3, window_bounds = array<i64: 440, 128>}]} {
    %c0 = arith.constant 0 : index
    %c0_0 = arith.constant 0 : index
    %0 = vector.load %arg1[%c0, %c0_0] : memref<440x128xbf16, #tpu.memory_space<vmem>>, vector<440x128xbf16>
    %c0_1 = arith.constant 0 : index
    %c0_2 = arith.constant 0 : index
    %1 = vector.load %arg2[%c0_1, %c0_2] : memref<128x128xbf16, #tpu.memory_space<vmem>>, vector<128x128xbf16>
    %cst = arith.constant dense<0.000000e+00> : vector<440x128xf32>
    %2 = tpu.matmul %0, %1, %cst {dimension_numbers = #tpu.dot_dimension_numbers<[1], [0], [0], [1], [0, 0, 1, 1], [], []>} : vector<440x128xbf16>, vector<128x128xbf16>, vector<440x128xf32> -> vector<440x128xf32>
    %c0_3 = arith.constant 0 : index
    %c0_4 = arith.constant 0 : index
    %3 = vector.load %arg3[%c0_3, %c0_4] : memref<1x128xf32, #tpu.memory_space<vmem>>, vector<1x128xf32>
    %4 = vector.broadcast %3 : vector<1x128xf32> to vector<440x128xf32>
    %5 = arith.addf %2, %4 : vector<440x128xf32>
    %6 = arith.negf %5 : vector<440x128xf32>
    %7 = math.exp %6 : vector<440x128xf32>
    %cst_5 = arith.constant 1.000000e+00 : f32
    %8 = vector.broadcast %cst_5 : f32 to vector<440x128xf32>
    %9 = arith.addf %8, %7 : vector<440x128xf32>
    %10 = arith.divf %8, %9 : vector<440x128xf32>
    %c0_6 = arith.constant 0 : index
    %c0_7 = arith.constant 0 : index
    %11 = vector.load %arg4[%c0_6, %c0_7] : memref<440x128xf32, #tpu.memory_space<vmem>>, vector<440x128xf32>
    tpu.vector_store %arg4[%c0_6, %c0_7], %10 {strides = array<i32>} : memref<440x128xf32, #tpu.memory_space<vmem>>, vector<440x128xf32>,
    return
  }
  func.func @transform_0(%arg0: i32) -> (i32, i32) {
    %c0_i32 = arith.constant 0 : i32
    %c0_i32_0 = arith.constant 0 : i32
    return %arg0, %c0_i32 : i32, i32
  }
  func.func @transform_1(%arg0: i32) -> (i32, i32) {
    %c0_i32 = arith.constant 0 : i32
    %c0_i32_0 = arith.constant 0 : i32
    %c0_i32_1 = arith.constant 0 : i32
    return %c0_i32, %c0_i32_0 : i32, i32
  }
  func.func @transform_2(%arg0: i32) -> (i32, i32) {
    %c0_i32 = arith.constant 0 : i32
    %c0_i32_0 = arith.constant 0 : i32
    %c0_i32_1 = arith.constant 0 : i32
    return %c0_i32, %c0_i32_0 : i32, i32
  }
  func.func @transform_3(%arg0: i32) -> (i32, i32) {
    %c0_i32 = arith.constant 0 : i32
    %c0_i32_0 = arith.constant 0 : i32
    return %arg0, %c0_i32 : i32, i32
  }
}

</mosaic_0001>

<llo_original>
// kernel: decoder_forward.3
$region0: #{decoder_forward.3}
  #allocation0 [shape = 'u32[]', space=smem, size = 0x4, offset = 0x4, fixed_abs, tag = 'smem constant byte address 0x4 - core index']
  #allocation1 [shape = 'u32[144,128]{1,0:T(1,128)}', space=vmem, size = 0x12000, scoped, tag = 'internal scratch']
  %s0 = inlined_call_operand.vmem [shape: bf16[168,256], index: 0, kind: input, shape index: {}]
  %s1 = inlined_call_operand.vmem [shape: bf16[256,256], index: 1, kind: input, shape index: {}]
  %s2 = inlined_call_operand.vmem [shape: f32[1,256], index: 2, kind: input, shape index: {}]
  %s3 = inlined_call_operand.vmem [shape: bf16[168,256], index: 3, kind: output, shape index: {}]
  %s4 = sld [smem:[#allocation0]]
  $region22: #{decoder_forward.3} parent=0
    _
  %s6 = ssub.s32 1, %s4
  %s7 = scalar_select 0, %s6, %s4
  // Predicated region
  $region2: #{decoder_forward.3} parent=0 // pred_check
    _
  $region3: #{decoder_forward.3} parent=0 // pred_check_branch
    %9 = sbr.rel (0) target = $region5
  $region4: #{decoder_forward.3} parent=0 // pred_region
    _
  $region5: #{decoder_forward.3} parent=0 // pred_fallthru
    _
  // Predicated region
  $region6: #{decoder_forward.3} parent=0 // pred_check
    _
  $region7: #{decoder_forward.3} parent=0 // pred_check_branch
    %11 = sbr.rel (0) target = $region9
  $region8: #{decoder_forward.3} parent=0 // pred_region
    _
  $region9: #{decoder_forward.3} parent=0 // pred_fallthru
    _
  // Predicated region
  $region10: #{decoder_forward.3} parent=0 // pred_check
    _
  $region11: #{decoder_forward.3} parent=0 // pred_check_branch
    %13 = sbr.rel (0) target = $region13
  $region12: #{decoder_forward.3} parent=0 // pred_region
    _
  $region13: #{decoder_forward.3} parent=0 // pred_fallthru
    _
  %v14 = vld [vmem:[%s0] sm:$0xff]
  %v15 = vld [vmem:[%s0 + $0x8] sm:$0xff]
  %v16 = vld [vmem:[%s0 + $0x10] sm:$0xff]
  %v17 = vld [vmem:[%s0 + $0x18] sm:$0xff]
  %v18 = vld [vmem:[%s0 + $0x20] sm:$0xff]
  %v19 = vld [vmem:[%s0 + $0x28] sm:$0xff]
  %v20 = vld [vmem:[%s0 + $0x30] sm:$0xff]
  %v21 = vld [vmem:[%s0 + $0x38] sm:$0xff]
  %v22 = vld [vmem:[%s0 + $0x40] sm:$0xff]
  %v23 = vld [vmem:[%s0 + $0x48] sm:$0xff]
  %v24 = vld [vmem:[%s0 + $0x50] sm:$0xff]
  %v25 = vld [vmem:[%s0 + $0x58] sm:$0xff]
  %v26 = vld [vmem:[%s0 + $0x60] sm:$0xff]
  %v27 = vld [vmem:[%s0 + $0x68] sm:$0xff]
  %v28 = vld [vmem:[%s0 + $0x70] sm:$0xff]
  %v29 = vld [vmem:[%s0 + $0x78] sm:$0xff]
  %v30 = vld [vmem:[%s0 + $0x80] sm:$0xff]
  %v31 = vld [vmem:[%s0 + $0x88] sm:$0xff]
  %v32 = vld [vmem:[%s0 + $0x90] sm:$0xff]
  %v33 = vld [vmem:[%s0 + $0x98] sm:$0xff]
  %v34 = vld [vmem:[%s0 + $0xa0] sm:$0xff]
  %v35 = vld [vmem:[%s1] sm:$0xff]
  %v36 = vld [vmem:[%s1 + $0x8] sm:$0xff]
  %v37 = vld [vmem:[%s1 + $0x10] sm:$0xff]
  %v38 = vld [vmem:[%s1 + $0x18] sm:$0xff]
  %v39 = vld [vmem:[%s1 + $0x20] sm:$0xff]
  %v40 = vld [vmem:[%s1 + $0x28] sm:$0xff]
  %v41 = vld [vmem:[%s1 + $0x30] sm:$0xff]
  %v42 = vld [vmem:[%s1 + $0x38] sm:$0xff]
  %v43 = vld [vmem:[%s1 + $0x40] sm:$0xff]
  %v44 = vld [vmem:[%s1 + $0x48] sm:$0xff]
  %v45 = vld [vmem:[%s1 + $0x50] sm:$0xff]
  %v46 = vld [vmem:[%s1 + $0x58] sm:$0xff]
  %v47 = vld [vmem:[%s1 + $0x60] sm:$0xff]
  %v48 = vld [vmem:[%s1 + $0x68] sm:$0xff]
  %v49 = vld [vmem:[%s1 + $0x70] sm:$0xff]
  %v50 = vld [vmem:[%s1 + $0x78] sm:$0xff]
  %v51 = vld [vmem:[%s1 + $0x80] sm:$0xff]
  %v52 = vld [vmem:[%s1 + $0x88] sm:$0xff]
  %v53 = vld [vmem:[%s1 + $0x90] sm:$0xff]
  %v54 = vld [vmem:[%s1 + $0x98] sm:$0xff]
  %v55 = vld [vmem:[%s1 + $0xa0] sm:$0xff]
  %v56 = vld [vmem:[%s1 + $0xa8] sm:$0xff]
  %v57 = vld [vmem:[%s1 + $0xb0] sm:$0xff]
  %v58 = vld [vmem:[%s1 + $0xb8] sm:$0xff]
  %v59 = vld [vmem:[%s1 + $0xc0] sm:$0xff]
  %v60 = vld [vmem:[%s1 + $0xc8] sm:$0xff]
  %v61 = vld [vmem:[%s1 + $0xd0] sm:$0xff]
  %v62 = vld [vmem:[%s1 + $0xd8] sm:$0xff]
  %v63 = vld [vmem:[%s1 + $0xe0] sm:$0xff]
  %v64 = vld [vmem:[%s1 + $0xe8] sm:$0xff]
  %v65 = vld [vmem:[%s1 + $0xf0] sm:$0xff]
  %v66 = vld [vmem:[%s1 + $0xf8] sm:$0xff]
  %v67 = vld [vmem:[%s2] sm:$0x3]
  %v69 = vlaneseq
  %v70 = vshrl.u32 %v69, 7
  %v71 = vsub.s32 0, %v70
  %v72 = vrot.slane %v67, %v71
  %v73 = vlaneseq
  %v74 = vshrl.u32 %v73, 7
  %v75 = vsub.s32 1, %v74
  %v76 = vrot.slane %v67, %v75
  %v100 = vunpack.c.l.b16 %v14
  %v101 = vunpack.c.h.b16 %v14
  %v102 = vunpack.c.l.b16 %v15
  %v103 = vunpack.c.h.b16 %v15
  %v104 = vunpack.c.l.b16 %v16
  %v105 = vunpack.c.h.b16 %v16
  %v106 = vunpack.c.l.b16 %v17
  %v107 = vunpack.c.h.b16 %v17
  %v108 = vunpack.c.l.b16 %v18
  %v109 = vunpack.c.h.b16 %v18
  %v110 = vunpack.c.l.b16 %v19
  %v111 = vunpack.c.h.b16 %v19
  %v112 = vunpack.c.l.b16 %v20
  %v113 = vunpack.c.h.b16 %v20
  %v114 = vunpack.c.l.b16 %v21
  %v115 = vunpack.c.h.b16 %v21
  %v116 = vunpack.c.l.b16 %v22
  %v117 = vunpack.c.h.b16 %v22
  %v118 = vunpack.c.l.b16 %v23
  %v119 = vunpack.c.h.b16 %v23
  %v120 = vunpack.c.l.b16 %v24
  %v121 = vunpack.c.h.b16 %v24
  %v122 = vunpack.c.l.b16 %v25
  %v123 = vunpack.c.h.b16 %v25
  %v124 = vunpack.c.l.b16 %v26
  %v125 = vunpack.c.h.b16 %v26
  %v126 = vunpack.c.l.b16 %v27
  %v127 = vunpack.c.h.b16 %v27
  %v128 = vunpack.c.l.b16 %v28
  %v129 = vunpack.c.h.b16 %v28
  %v130 = vunpack.c.l.b16 %v29
  %v131 = vunpack.c.h.b16 %v29
  %v132 = vunpack.c.l.b16 %v30
  %v133 = vunpack.c.h.b16 %v30
  %v134 = vunpack.c.l.b16 %v31
  %v135 = vunpack.c.h.b16 %v31
  %v136 = vunpack.c.l.b16 %v32
  %v137 = vunpack.c.h.b16 %v32
  %v138 = vunpack.c.l.b16 %v33
  %v139 = vunpack.c.h.b16 %v33
  %v140 = vunpack.c.l.b16 %v34
  %v141 = vunpack.c.h.b16 %v34
  %v142 = vpack.c.b16 %v102, %v100
  %v143 = vpack.c.b16 %v103, %v101
  %v144 = vpack.c.b16 %v106, %v104
  %v145 = vpack.c.b16 %v107, %v105
  %v146 = vpack.c.b16 %v110, %v108
  %v147 = vpack.c.b16 %v111, %v109
  %v148 = vpack.c.b16 %v114, %v112
  %v149 = vpack.c.b16 %v115, %v113
  %v150 = vpack.c.b16 %v118, %v116
  %v151 = vpack.c.b16 %v119, %v117
  %v152 = vpack.c.b16 %v122, %v120
  %v153 = vpack.c.b16 %v123, %v121
  %v154 = vpack.c.b16 %v126, %v124
  %v155 = vpack.c.b16 %v127, %v125
  %v156 = vpack.c.b16 %v130, %v128
  %v157 = vpack.c.b16 %v131, %v129
  %v158 = vpack.c.b16 %v134, %v132
  %v159 = vpack.c.b16 %v135, %v133
  %v160 = vpack.c.b16 %v138, %v136
  %v161 = vpack.c.b16 %v139, %v137
  %v162 = vpack.c.b16 %v140, %v140
  %v163 = vpack.c.b16 %v141, %v141
  %v218 = vunpack.c.l.b16 %v35
  %v219 = vunpack.c.h.b16 %v35
  %v220 = vunpack.c.l.b16 %v36
  %v221 = vunpack.c.h.b16 %v36
  %v222 = vunpack.c.l.b16 %v37
  %v223 = vunpack.c.h.b16 %v37
  %v224 = vunpack.c.l.b16 %v38
  %v225 = vunpack.c.h.b16 %v38
  %v226 = vunpack.c.l.b16 %v39
  %v227 = vunpack.c.h.b16 %v39
  %v228 = vunpack.c.l.b16 %v40
  %v229 = vunpack.c.h.b16 %v40
  %v230 = vunpack.c.l.b16 %v41
  %v231 = vunpack.c.h.b16 %v41
  %v232 = vunpack.c.l.b16 %v42
  %v233 = vunpack.c.h.b16 %v42
  %v234 = vunpack.c.l.b16 %v43
  %v235 = vunpack.c.h.b16 %v43
  %v236 = vunpack.c.l.b16 %v44
  %v237 = vunpack.c.h.b16 %v44
  %v238 = vunpack.c.l.b16 %v45
  %v239 = vunpack.c.h.b16 %v45
  %v240 = vunpack.c.l.b16 %v46
  %v241 = vunpack.c.h.b16 %v46
  %v242 = vunpack.c.l.b16 %v47
  %v243 = vunpack.c.h.b16 %v47
  %v244 = vunpack.c.l.b16 %v48
  %v245 = vunpack.c.h.b16 %v48
  %v246 = vunpack.c.l.b16 %v49
  %v247 = vunpack.c.h.b16 %v49
  %v248 = vunpack.c.l.b16 %v50
  %v249 = vunpack.c.h.b16 %v50
  %v250 = vunpack.c.l.b16 %v51
  %v251 = vunpack.c.h.b16 %v51
  %v252 = vunpack.c.l.b16 %v52
  %v253 = vunpack.c.h.b16 %v52
  %v254 = vunpack.c.l.b16 %v53
  %v255 = vunpack.c.h.b16 %v53
  %v256 = vunpack.c.l.b16 %v54
  %v257 = vunpack.c.h.b16 %v54
  %v258 = vunpack.c.l.b16 %v55
  %v259 = vunpack.c.h.b16 %v55
  %v260 = vunpack.c.l.b16 %v56
  %v261 = vunpack.c.h.b16 %v56
  %v262 = vunpack.c.l.b16 %v57
  %v263 = vunpack.c.h.b16 %v57
  %v264 = vunpack.c.l.b16 %v58
  %v265 = vunpack.c.h.b16 %v58
  %v266 = vunpack.c.l.b16 %v59
  %v267 = vunpack.c.h.b16 %v59
  %v268 = vunpack.c.l.b16 %v60
  %v269 = vunpack.c.h.b16 %v60
  %v270 = vunpack.c.l.b16 %v61
  %v271 = vunpack.c.h.b16 %v61
  %v272 = vunpack.c.l.b16 %v62
  %v273 = vunpack.c.h.b16 %v62
  %v274 = vunpack.c.l.b16 %v63
  %v275 = vunpack.c.h.b16 %v63
  %v276 = vunpack.c.l.b16 %v64
  %v277 = vunpack.c.h.b16 %v64
  %v278 = vunpack.c.l.b16 %v65
  %v279 = vunpack.c.h.b16 %v65
  %v280 = vunpack.c.l.b16 %v66
  %v281 = vunpack.c.h.b16 %v66
  %v282 = vpack.c.b16 %v220, %v218
  %v283 = vpack.c.b16 %v221, %v219
  %v284 = vpack.c.b16 %v224, %v222
  %v285 = vpack.c.b16 %v225, %v223
  %v286 = vpack.c.b16 %v228, %v226
  %v287 = vpack.c.b16 %v229, %v227
  %v288 = vpack.c.b16 %v232, %v230
  %v289 = vpack.c.b16 %v233, %v231
  %v290 = vpack.c.b16 %v236, %v234
  %v291 = vpack.c.b16 %v237, %v235
  %v292 = vpack.c.b16 %v240, %v238
  %v293 = vpack.c.b16 %v241, %v239
  %v294 = vpack.c.b16 %v244, %v242
  %v295 = vpack.c.b16 %v245, %v243
  %v296 = vpack.c.b16 %v248, %v246
  %v297 = vpack.c.b16 %v249, %v247
  %v298 = vpack.c.b16 %v252, %v250
  %v299 = vpack.c.b16 %v253, %v251
  %v300 = vpack.c.b16 %v256, %v254
  %v301 = vpack.c.b16 %v257, %v255
  %v302 = vpack.c.b16 %v260, %v258
  %v303 = vpack.c.b16 %v261, %v259
  %v304 = vpack.c.b16 %v264, %v262
  %v305 = vpack.c.b16 %v265, %v263
  %v306 = vpack.c.b16 %v268, %v266
  %v307 = vpack.c.b16 %v269, %v267
  %v308 = vpack.c.b16 %v272, %v270
  %v309 = vpack.c.b16 %v273, %v271
  %v310 = vpack.c.b16 %v276, %v274
  %v311 = vpack.c.b16 %v277, %v275
  %v312 = vpack.c.b16 %v280, %v278
  %v313 = vpack.c.b16 %v281, %v279
  %346 = vmatprep.subr.bf16.mxu0 %v283
  %347 = vmatpush1.bf16.msra.mxu0 %v282
  %348 = vmatprep.subr.bf16.mxu0 %v285
  %349 = vmatpush1.bf16.msra.mxu0 %v284
  %350 = vmatprep.subr.bf16.mxu0 %v287
  %351 = vmatpush1.bf16.msra.mxu0 %v286
  %352 = vmatprep.subr.bf16.mxu0 %v289
  %353 = vmatpush1.bf16.msra.mxu0 %v288
  %354 = vmatprep.subr.bf16.mxu0 %v291
  %355 = vmatpush1.bf16.msra.mxu0 %v290
  %356 = vmatprep.subr.bf16.mxu0 %v293
  %357 = vmatpush1.bf16.msra.mxu0 %v292
  %358 = vmatprep.subr.bf16.mxu0 %v295
  %359 = vmatpush1.bf16.msra.mxu0 %v294
  %360 = vmatprep.subr.bf16.mxu0 %v297
  %361 = vmatpush1.bf16.msra.mxu0 %v296
  %362 = vmatprep.subr.bf16.mxu0 %v299
  %363 = vmatpush1.bf16.msra.mxu0 %v298
  %364 = vmatprep.subr.bf16.mxu0 %v301
  %365 = vmatpush1.bf16.msra.mxu0 %v300
  %366 = vmatprep.subr.bf16.mxu0 %v303
  %367 = vmatpush1.bf16.msra.mxu0 %v302
  %368 = vmatprep.subr.bf16.mxu0 %v305
  %369 = vmatpush1.bf16.msra.mxu0 %v304
  %370 = vmatprep.subr.bf16.mxu0 %v307
  %371 = vmatpush1.bf16.msra.mxu0 %v306
  %372 = vmatprep.subr.bf16.mxu0 %v309
  %373 = vmatpush1.bf16.msra.mxu0 %v308
  %374 = vmatprep.subr.bf16.mxu0 %v311
  %375 = vmatpush1.bf16.msra.mxu0 %v310
  %376 = vmatprep.subr.bf16.mxu0 %v313
  %377 = vmatpush1.bf16.msra.mxu0 %v312
  %378 = vmatprep.mubr.bf16.mxu0 %v143
  %379 = vmatmul.mubr.bf16.gmra.mrb[0].mxu0 %v142
  %v380 = vpop.f32.mrb[0].mxu0
  %v381 = vadd.f32 %v72, %v380
  %v382 = vpop.f32.mrb[0].mxu0
  %v383 = vadd.f32 %v76, %v382
  %v384 = vpop.f32.mrb[0].mxu0
  %v385 = vadd.f32 %v72, %v384
  %v386 = vpop.f32.mrb[0].mxu0
  %v387 = vadd.f32 %v76, %v386
  %388 = vmatprep.mubr.bf16.mxu0 %v145
  %389 = vmatmul.mubr.bf16.gmra.mrb[0].mxu0 %v144
  %v390 = vpop.f32.mrb[0].mxu0
  %v391 = vadd.f32 %v72, %v390
  %v392 = vpop.f32.mrb[0].mxu0
  %v393 = vadd.f32 %v76, %v392
  %v394 = vpop.f32.mrb[0].mxu0
  %v395 = vadd.f32 %v72, %v394
  %v396 = vpop.f32.mrb[0].mxu0
  %v397 = vadd.f32 %v76, %v396
  %398 = vmatprep.mubr.bf16.mxu0 %v147
  %399 = vmatmul.mubr.bf16.gmra.mrb[0].mxu0 %v146
  %v400 = vpop.f32.mrb[0].mxu0
  %v401 = vadd.f32 %v72, %v400
  %v402 = vpop.f32.mrb[0].mxu0
  %v403 = vadd.f32 %v76, %v402
  %v404 = vpop.f32.mrb[0].mxu0
  %v405 = vadd.f32 %v72, %v404
  %v406 = vpop.f32.mrb[0].mxu0
  %v407 = vadd.f32 %v76, %v406
  %408 = vmatprep.mubr.bf16.mxu0 %v149
  %409 = vmatmul.mubr.bf16.gmra.mrb[0].mxu0 %v148
  %v410 = vpop.f32.mrb[0].mxu0
  %v411 = vadd.f32 %v72, %v410
  %v412 = vpop.f32.mrb[0].mxu0
  %v413 = vadd.f32 %v76, %v412
  %v414 = vpop.f32.mrb[0].mxu0
  %v415 = vadd.f32 %v72, %v414
  %v416 = vpop.f32.mrb[0].mxu0
  %v417 = vadd.f32 %v76, %v416
  %418 = vmatprep.mubr.bf16.mxu0 %v151
  %419 = vmatmul.mubr.bf16.gmra.mrb[0].mxu0 %v150
  %v420 = vpop.f32.mrb[0].mxu0
  %v421 = vadd.f32 %v72, %v420
  %v422 = vpop.f32.mrb[0].mxu0
  %v423 = vadd.f32 %v76, %v422
  %v424 = vpop.f32.mrb[0].mxu0
  %v425 = vadd.f32 %v72, %v424
  %v426 = vpop.f32.mrb[0].mxu0
  %v427 = vadd.f32 %v76, %v426
  %428 = vmatprep.mubr.bf16.mxu0 %v153
  %429 = vmatmul.mubr.bf16.gmra.mrb[0].mxu0 %v152
  %v430 = vpop.f32.mrb[0].mxu0
  %v431 = vadd.f32 %v72, %v430
  %v432 = vpop.f32.mrb[0].mxu0
  %v433 = vadd.f32 %v76, %v432
  %v434 = vpop.f32.mrb[0].mxu0
  %v435 = vadd.f32 %v72, %v434
  %v436 = vpop.f32.mrb[0].mxu0
  %v437 = vadd.f32 %v76, %v436
  %438 = vmatprep.mubr.bf16.mxu0 %v155
  %439 = vmatmul.mubr.bf16.gmra.mrb[0].mxu0 %v154
  %v440 = vpop.f32.mrb[0].mxu0
  %v441 = vadd.f32 %v72, %v440
  %v442 = vpop.f32.mrb[0].mxu0
  %v443 = vadd.f32 %v76, %v442
  %v444 = vpop.f32.mrb[0].mxu0
  %v445 = vadd.f32 %v72, %v444
  %v446 = vpop.f32.mrb[0].mxu0
  %v447 = vadd.f32 %v76, %v446
  %448 = vmatprep.mubr.bf16.mxu0 %v157
  %449 = vmatmul.mubr.bf16.gmra.mrb[0].mxu0 %v156
  %v450 = vpop.f32.mrb[0].mxu0
  %v451 = vadd.f32 %v72, %v450
  %v452 = vpop.f32.mrb[0].mxu0
  %v453 = vadd.f32 %v76, %v452
  %v454 = vpop.f32.mrb[0].mxu0
  %v455 = vadd.f32 %v72, %v454
  %v456 = vpop.f32.mrb[0].mxu0
  %v457 = vadd.f32 %v76, %v456
  %458 = vmatprep.mubr.bf16.mxu0 %v159
  %459 = vmatmul.mubr.bf16.gmra.mrb[0].mxu0 %v158
  %v460 = vpop.f32.mrb[0].mxu0
  %v461 = vadd.f32 %v72, %v460
  %v462 = vpop.f32.mrb[0].mxu0
  %v463 = vadd.f32 %v76, %v462
  %v464 = vpop.f32.mrb[0].mxu0
  %v465 = vadd.f32 %v72, %v464
  %v466 = vpop.f32.mrb[0].mxu0
  %v467 = vadd.f32 %v76, %v466
  %468 = vmatprep.mubr.bf16.mxu0 %v161
  %469 = vmatmul.mubr.bf16.gmra.mrb[0].mxu0 %v160
  %v470 = vpop.f32.mrb[0].mxu0
  %v471 = vadd.f32 %v72, %v470
  %v472 = vpop.f32.mrb[0].mxu0
  %v473 = vadd.f32 %v76, %v472
  %v474 = vpop.f32.mrb[0].mxu0
  %v475 = vadd.f32 %v72, %v474
  %v476 = vpop.f32.mrb[0].mxu0
  %v477 = vadd.f32 %v76, %v476
  %478 = vmatprep.mubr.bf16.mxu0 %v163
  %479 = vmatmul.mubr.bf16.gmra.mrb[0].mxu0 %v162
  %v480 = vpop.f32.mrb[0].mxu0
  %v481 = vadd.f32 %v72, %v480
  %v482 = vpop.f32.mrb[0].mxu0
  %v483 = vadd.f32 %v76, %v482
  %v484 = vpop.f32.mrb[0].mxu0
  %v485 = vpop.f32.mrb[0].mxu0
  %486 = vdwg.mxu0
  %v487 = vmax.f32 %v381, 0.0
  %v488 = vmax.f32 %v383, 0.0
  %v489 = vmax.f32 %v385, 0.0
  %v490 = vmax.f32 %v387, 0.0
  %v491 = vmax.f32 %v391, 0.0
  %v492 = vmax.f32 %v393, 0.0
  %v493 = vmax.f32 %v395, 0.0
  %v494 = vmax.f32 %v397, 0.0
  %v495 = vmax.f32 %v401, 0.0
  %v496 = vmax.f32 %v403, 0.0
  %v497 = vmax.f32 %v405, 0.0
  %v498 = vmax.f32 %v407, 0.0
  %v499 = vmax.f32 %v411, 0.0
  %v500 = vmax.f32 %v413, 0.0
  %v501 = vmax.f32 %v415, 0.0
  %v502 = vmax.f32 %v417, 0.0
  %v503 = vmax.f32 %v421, 0.0
  %v504 = vmax.f32 %v423, 0.0
  %v505 = vmax.f32 %v425, 0.0
  %v506 = vmax.f32 %v427, 0.0
  %v507 = vmax.f32 %v431, 0.0
  %v508 = vmax.f32 %v433, 0.0
  %v509 = vmax.f32 %v435, 0.0
  %v510 = vmax.f32 %v437, 0.0
  %v511 = vmax.f32 %v441, 0.0
  %v512 = vmax.f32 %v443, 0.0
  %v513 = vmax.f32 %v445, 0.0
  %v514 = vmax.f32 %v447, 0.0
  %v515 = vmax.f32 %v451, 0.0
  %v516 = vmax.f32 %v453, 0.0
  %v517 = vmax.f32 %v455, 0.0
  %v518 = vmax.f32 %v457, 0.0
  %v519 = vmax.f32 %v461, 0.0
  %v520 = vmax.f32 %v463, 0.0
  %v521 = vmax.f32 %v465, 0.0
  %v522 = vmax.f32 %v467, 0.0
  %v523 = vmax.f32 %v471, 0.0
  %v524 = vmax.f32 %v473, 0.0
  %v525 = vmax.f32 %v475, 0.0
  %v526 = vmax.f32 %v477, 0.0
  %v527 = vmax.f32 %v481, 0.0
  %v528 = vmax.f32 %v483, 0.0
  %v529 = vpack.c.bf16 %v489, %v487
  %v530 = vpack.c.bf16 %v490, %v488
  %v531 = vpack.c.bf16 %v493, %v491
  %v532 = vpack.c.bf16 %v494, %v492
  %v533 = vpack.c.bf16 %v497, %v495
  %v534 = vpack.c.bf16 %v498, %v496
  %v535 = vpack.c.bf16 %v501, %v499
  %v536 = vpack.c.bf16 %v502, %v500
  %v537 = vpack.c.bf16 %v505, %v503
  %v538 = vpack.c.bf16 %v506, %v504
  %v539 = vpack.c.bf16 %v509, %v507
  %v540 = vpack.c.bf16 %v510, %v508
  %v541 = vpack.c.bf16 %v513, %v511
  %v542 = vpack.c.bf16 %v514, %v512
  %v543 = vpack.c.bf16 %v517, %v515
  %v544 = vpack.c.bf16 %v518, %v516
  %v545 = vpack.c.bf16 %v521, %v519
  %v546 = vpack.c.bf16 %v522, %v520
  %v547 = vpack.c.bf16 %v525, %v523
  %v548 = vpack.c.bf16 %v526, %v524
  %v549 = vpack.c.bf16 %v527, %v527
  %v550 = vpack.c.bf16 %v528, %v528
  %v573 = vunpack.c.l.b16 %v529
  %v574 = vunpack.c.l.b16 %v530
  %v575 = vunpack.c.h.b16 %v529
  %v576 = vunpack.c.h.b16 %v530
  %v577 = vunpack.c.l.b16 %v531
  %v578 = vunpack.c.l.b16 %v532
  %v579 = vunpack.c.h.b16 %v531
  %v580 = vunpack.c.h.b16 %v532
  %v581 = vunpack.c.l.b16 %v533
  %v582 = vunpack.c.l.b16 %v534
  %v583 = vunpack.c.h.b16 %v533
  %v584 = vunpack.c.h.b16 %v534
  %v585 = vunpack.c.l.b16 %v535
  %v586 = vunpack.c.l.b16 %v536
  %v587 = vunpack.c.h.b16 %v535
  %v588 = vunpack.c.h.b16 %v536
  %v589 = vunpack.c.l.b16 %v537
  %v590 = vunpack.c.l.b16 %v538
  %v591 = vunpack.c.h.b16 %v537
  %v592 = vunpack.c.h.b16 %v538
  %v593 = vunpack.c.l.b16 %v539
  %v594 = vunpack.c.l.b16 %v540
  %v595 = vunpack.c.h.b16 %v539
  %v596 = vunpack.c.h.b16 %v540
  %v597 = vunpack.c.l.b16 %v541
  %v598 = vunpack.c.l.b16 %v542
  %v599 = vunpack.c.h.b16 %v541
  %v600 = vunpack.c.h.b16 %v542
  %v601 = vunpack.c.l.b16 %v543
  %v602 = vunpack.c.l.b16 %v544
  %v603 = vunpack.c.h.b16 %v543
  %v604 = vunpack.c.h.b16 %v544
  %v605 = vunpack.c.l.b16 %v545
  %v606 = vunpack.c.l.b16 %v546
  %v607 = vunpack.c.h.b16 %v545
  %v608 = vunpack.c.h.b16 %v546
  %v609 = vunpack.c.l.b16 %v547
  %v610 = vunpack.c.l.b16 %v548
  %v611 = vunpack.c.h.b16 %v547
  %v612 = vunpack.c.h.b16 %v548
  %v613 = vunpack.c.l.b16 %v549
  %v614 = vunpack.c.l.b16 %v550
  %v615 = vpack.c.b16 %v574, %v573
  %v616 = vpack.c.b16 %v576, %v575
  %v617 = vpack.c.b16 %v578, %v577
  %v618 = vpack.c.b16 %v580, %v579
  %v619 = vpack.c.b16 %v582, %v581
  %v620 = vpack.c.b16 %v584, %v583
  %v621 = vpack.c.b16 %v586, %v585
  %v622 = vpack.c.b16 %v588, %v587
  %v623 = vpack.c.b16 %v590, %v589
  %v624 = vpack.c.b16 %v592, %v591
  %v625 = vpack.c.b16 %v594, %v593
  %v626 = vpack.c.b16 %v596, %v595
  %v627 = vpack.c.b16 %v598, %v597
  %v628 = vpack.c.b16 %v600, %v599
  %v629 = vpack.c.b16 %v602, %v601
  %v630 = vpack.c.b16 %v604, %v603
  %v631 = vpack.c.b16 %v606, %v605
  %v632 = vpack.c.b16 %v608, %v607
  %v633 = vpack.c.b16 %v610, %v609
  %v634 = vpack.c.b16 %v612, %v611
  %v635 = vpack.c.b16 %v614, %v613
  %657 = vst [vmem:[%s3] sm:$0xff] %v615
  %658 = vst [vmem:[%s3 + $0x8] sm:$0xff] %v616
  %659 = vst [vmem:[%s3 + $0x10] sm:$0xff] %v617
  %660 = vst [vmem:[%s3 + $0x18] sm:$0xff] %v618
  %661 = vst [vmem:[%s3 + $0x20] sm:$0xff] %v619
  %662 = vst [vmem:[%s3 + $0x28] sm:$0xff] %v620
  %663 = vst [vmem:[%s3 + $0x30] sm:$0xff] %v621
  %664 = vst [vmem:[%s3 + $0x38] sm:$0xff] %v622
  %665 = vst [vmem:[%s3 + $0x40] sm:$0xff] %v623
  %666 = vst [vmem:[%s3 + $0x48] sm:$0xff] %v624
  %667 = vst [vmem:[%s3 + $0x50] sm:$0xff] %v625
  %668 = vst [vmem:[%s3 + $0x58] sm:$0xff] %v626
  %669 = vst [vmem:[%s3 + $0x60] sm:$0xff] %v627
  %670 = vst [vmem:[%s3 + $0x68] sm:$0xff] %v628
  %671 = vst [vmem:[%s3 + $0x70] sm:$0xff] %v629
  %672 = vst [vmem:[%s3 + $0x78] sm:$0xff] %v630
  %673 = vst [vmem:[%s3 + $0x80] sm:$0xff] %v631
  %674 = vst [vmem:[%s3 + $0x88] sm:$0xff] %v632
  %675 = vst [vmem:[%s3 + $0x90] sm:$0xff] %v633
  %676 = vst [vmem:[%s3 + $0x98] sm:$0xff] %v634
  %677 = vst [vmem:[%s3 + $0xa0] sm:$0xff] %v635
  // Predicated region
  $region14: #{decoder_forward.3} parent=0 // pred_check
    _
  $region15: #{decoder_forward.3} parent=0 // pred_check_branch
    %679 = sbr.rel (0) target = $region17
  $region16: #{decoder_forward.3} parent=0 // pred_region
    _
  $region17: #{decoder_forward.3} parent=0 // pred_fallthru
    _
  // Predicated region
  $region18: #{decoder_forward.3} parent=0 // pred_check
    _
  $region19: #{decoder_forward.3} parent=0 // pred_check_branch
    %681 = sbr.rel (0) target = $region21
  $region20: #{decoder_forward.3} parent=0 // pred_region
    _
  $region21: #{decoder_forward.3} parent=0 // pred_fallthru
    _

// kernel: decoder_forward.4
$region0: #{decoder_forward.4}
  #allocation0 [shape = 'u32[]', space=smem, size = 0x4, offset = 0x4, fixed_abs, tag = 'smem constant byte address 0x4 - core index']
  #allocation1 [shape = 'u32[144,128]{1,0:T(1,128)}', space=vmem, size = 0x12000, scoped, tag = 'internal scratch']
  %s0 = inlined_call_operand.vmem [shape: bf16[592,256], index: 0, kind: input, shape index: {}]
  %s1 = inlined_call_operand.vmem [shape: bf16[256,128], index: 1, kind: input, shape index: {}]
  %s2 = inlined_call_operand.vmem [shape: f32[1,128], index: 2, kind: input, shape index: {}]
  %s3 = inlined_call_operand.vmem [shape: bf16[592,128], index: 3, kind: output, shape index: {}]
  %s4 = sld [smem:[#allocation0]]
  $region45: #{decoder_forward.4} parent=0
    _
  %s6 = ssub.s32 1, %s4
  %s7 = scalar_select 0, %s6, %s4
  loop: start=0, step=1, limit=4
  $region2: #{decoder_forward.4} parent=0 // loop_pre_header
    _
  $region3: #{decoder_forward.4} parent=0 // loop_header
    %s9 = sphi 0, %s13
    %p10 = scmp.ge.s32.totalorder %s9, 4
    %s19 = sphi 0, %s21
    %s22 = sphi 0, %s19
    %s23 = sphi 0, %s22
    %s39 = sphi 0, %s23
    %s43 = sphi 0, %s43
    %s45 = sphi 0, %s43
    %s46 = sphi 0, %s45
    %s60 = sphi 0, %s46
    %s64 = sphi 0, %s64
    %s66 = sphi 0, %s64
    %s67 = sphi 0, %s66
    %s81 = sphi 0, %s67
    %s87 = sphi 0, %s89
    %s90 = sphi 0, %s87
    %s91 = sphi 0, %s90
    %s107 = sphi 0, %s91
  $region4: #{decoder_forward.4} parent=0 // loop_header_branch
    %12 = sbr.rel (%p10) target = $region8
  $region5: #{decoder_forward.4} parent=0 // loop_body
    %s14 = ssub.s32 %s9, 1
    %s15 = ssub.s32 %s9, 2
    %s16 = sadd.s32 %s9, 1
    %s17 = ssub.s32 %s9, %s16
    %p18 = scmp.eq.s32.totalorder %s17, 0
    %s20 = sadd.s32 %s19, 1
    %s21 = scalar_select %p18, %s19, %s20
    %p24 = pneg %p18
    %p25 = scmp.eq.s32.totalorder %s9, 1
    %p26 = por %p24, %p25
    %p27 = scmp.ne.s32.totalorder %s19, %s22
    %p28 = scmp.eq.s32.totalorder %s9, 0
    %p29 = por %p27, %p28
    %p30 = scmp.ne.s32.totalorder %s19, %s22
    %p31 = scmp.eq.s32.totalorder %s14, 1
    %p32 = por %p30, %p31
    %p33 = scmp.ne.s32.totalorder %s22, %s23
    %p34 = scmp.eq.s32.totalorder %s14, 0
    %p35 = por %p33, %p34
    %p36 = scmp.ne.s32.totalorder %s22, %s23
    %p37 = scmp.eq.s32.totalorder %s15, 1
    %p38 = por %p36, %p37
    %p40 = scmp.ne.s32.totalorder %s23, %s39
    %p41 = scmp.eq.s32.totalorder %s15, 0
    %p42 = por %p40, %p41
    %s44 = sadd.s32 %s43, 1
    %p47 = scmp.eq.s32.totalorder %s9, 1
    %p48 = scmp.ne.s32.totalorder %s43, %s45
    %p49 = scmp.eq.s32.totalorder %s9, 0
    %p50 = por %p48, %p49
    %p51 = scmp.ne.s32.totalorder %s43, %s45
    %p52 = scmp.eq.s32.totalorder %s14, 1
    %p53 = por %p51, %p52
    %p54 = scmp.ne.s32.totalorder %s45, %s46
    %p55 = scmp.eq.s32.totalorder %s14, 0
    %p56 = por %p54, %p55
    %p57 = scmp.ne.s32.totalorder %s45, %s46
    %p58 = scmp.eq.s32.totalorder %s15, 1
    %p59 = por %p57, %p58
    %p61 = scmp.ne.s32.totalorder %s46, %s60
    %p62 = scmp.eq.s32.totalorder %s15, 0
    %p63 = por %p61, %p62
    %s65 = sadd.s32 %s64, 1
    %p68 = scmp.eq.s32.totalorder %s9, 1
    %p69 = scmp.ne.s32.totalorder %s64, %s66
    %p70 = scmp.eq.s32.totalorder %s9, 0
    %p71 = por %p69, %p70
    %p72 = scmp.ne.s32.totalorder %s64, %s66
    %p73 = scmp.eq.s32.totalorder %s14, 1
    %p74 = por %p72, %p73
    %p75 = scmp.ne.s32.totalorder %s66, %s67
    %p76 = scmp.eq.s32.totalorder %s14, 0
    %p77 = por %p75, %p76
    %p78 = scmp.ne.s32.totalorder %s66, %s67
    %p79 = scmp.eq.s32.totalorder %s15, 1
    %p80 = por %p78, %p79
    %p82 = scmp.ne.s32.totalorder %s67, %s81
    %p83 = scmp.eq.s32.totalorder %s15, 0
    %p84 = por %p82, %p83
    %s85 = ssub.s32 %s9, %s16
    %p86 = scmp.eq.s32.totalorder %s85, 0
    %s88 = sadd.s32 %s87, 1
    %s89 = scalar_select %p86, %s87, %s88
    %p92 = pneg %p86
    %p93 = scmp.eq.s32.totalorder %s9, 1
    %p94 = por %p92, %p93
    %p95 = scmp.ne.s32.totalorder %s87, %s90
    %p96 = scmp.eq.s32.totalorder %s9, 0
    %p97 = por %p95, %p96
    %p98 = scmp.ne.s32.totalorder %s87, %s90
    %p99 = scmp.eq.s32.totalorder %s14, 1
    %p100 = por %p98, %p99
    %p101 = scmp.ne.s32.totalorder %s90, %s91
    %p102 = scmp.eq.s32.totalorder %s14, 0
    %p103 = por %p101, %p102
    %p104 = scmp.ne.s32.totalorder %s90, %s91
    %p105 = scmp.eq.s32.totalorder %s15, 1
    %p106 = por %p104, %p105
    %p108 = scmp.ne.s32.totalorder %s91, %s107
    %p109 = scmp.eq.s32.totalorder %s15, 0
    %p110 = por %p108, %p109
    %p111 = scmp.le.s32.totalorder 1, %s9
    %p112 = scmp.lt.s32.totalorder %s9, 3
    %p113 = pnand %p111, %p112
    %p114 = pneg %p113
    // Predicated region
    $region9: #{decoder_forward.4} parent=5 // pred_check
      _
    $region10: #{decoder_forward.4} parent=5 // pred_check_branch
      %116 = sbr.rel (%p113) target = $region12
    $region11: #{decoder_forward.4} parent=5 // pred_region
      %s117 = ssub.s32 %s9, 1
      // Predicated region
      $region13: #{decoder_forward.4} parent=11 // pred_check
        %p118 = pneg %p56
      $region14: #{decoder_forward.4} parent=11 // pred_check_branch
        %120 = sbr.rel (%p118) target = $region16
      $region15: #{decoder_forward.4} parent=11 // pred_region
        _
      $region16: #{decoder_forward.4} parent=11 // pred_fallthru
        _
      // Predicated region
      $region17: #{decoder_forward.4} parent=11 // pred_check
        %p121 = pneg %p77
      $region18: #{decoder_forward.4} parent=11 // pred_check_branch
        %123 = sbr.rel (%p121) target = $region20
      $region19: #{decoder_forward.4} parent=11 // pred_region
        _
      $region20: #{decoder_forward.4} parent=11 // pred_fallthru
        _
    $region12: #{decoder_forward.4} parent=5 // pred_fallthru
      _
    %p124 = scmp.lt.s32.totalorder %s9, 2
    // Predicated region
    $region21: #{decoder_forward.4} parent=5 // pred_check
      %p125 = pneg %p124
    $region22: #{decoder_forward.4} parent=5 // pred_check_branch
      %127 = sbr.rel (%p125) target = $region24
    $region23: #{decoder_forward.4} parent=5 // pred_region
      // Predicated region
      $region25: #{decoder_forward.4} parent=23 // pred_check
        %p128 = pneg %p29
      $region26: #{decoder_forward.4} parent=23 // pred_check_branch
        %130 = sbr.rel (%p128) target = $region28
      $region27: #{decoder_forward.4} parent=23 // pred_region
        %s131 = smul.u32 37, %s9
        %p132 = scmp.lt.s32.totalorder %s131, 73
        %s133 = scalar_select %p132, %s131, 73
        %s134 = smul.addr %s133, 2
        %s135 = smul.addr %s134, 4
        %s136 = scalar_lea.vmem %s0, %s135
        %s137 = smul.u32 37, %s9
      $region28: #{decoder_forward.4} parent=23 // pred_fallthru
        _
    $region24: #{decoder_forward.4} parent=5 // pred_fallthru
      _
    %p138 = scmp.le.s32.totalorder 1, %s9
    %p139 = scmp.lt.s32.totalorder %s9, 3
    %p140 = pnand %p138, %p139
    %p141 = pneg %p140
    // Predicated region
    $region29: #{decoder_forward.4} parent=5 // pred_check
      _
    $region30: #{decoder_forward.4} parent=5 // pred_check_branch
      %143 = sbr.rel (%p140) target = $region32
    $region31: #{decoder_forward.4} parent=5 // pred_region
      %s144 = ssub.s32 %s9, 1
      %s145 = smul.u32 37, %s14
      %p146 = scmp.lt.s32.totalorder %s145, 73
      %s147 = scalar_select %p146, %s145, 73
      %s148 = smul.addr %s147, 2
      %s149 = smul.addr %s148, 4
      %s150 = scalar_lea.vmem %s0, %s149
      %p151 = pneg %p35
      %p152 = pneg %p32
      %p153 = pneg %p56
      %p154 = pneg %p53
      %p155 = pneg %p77
      %p156 = pneg %p74
      %p157 = pneg %p103
      %p158 = pneg %p100
      %s159 = smul.u32 37, %s14
      %p160 = scmp.lt.s32.totalorder %s159, 73
      %s161 = scalar_select %p160, %s159, 73
      %s162 = smul.addr %s161, 4
      %s163 = scalar_lea.vmem %s3, %s162
      %s164 = smul.u32 37, %s14
      %p165 = scmp.lt.s32.totalorder %s164, 73
      %s166 = scalar_select %p165, %s164, 73
      %s167 = smul.addr %s166, 2
      %s168 = smul.addr %s167, 4
      %s169 = scalar_lea.vmem %s0, %s168
      %s170 = smul.u32 37, %s14
      %s171 = smul.u32 37, %s14
      %p172 = scmp.lt.s32.totalorder %s171, 73
      %s173 = scalar_select %p172, %s171, 73
      %s174 = smul.addr %s173, 4
      %s175 = scalar_lea.vmem %s3, %s174
      %s176 = smul.u32 37, %s14
      %v178 = vld [vmem:[%s169] sm:$0xff]
      %v179 = vld [vmem:[%s169 + $0x8] sm:$0xff]
      %v180 = vld [vmem:[%s169 + $0x10] sm:$0xff]
      %v181 = vld [vmem:[%s169 + $0x18] sm:$0xff]
      %v182 = vld [vmem:[%s169 + $0x20] sm:$0xff]
      %v183 = vld [vmem:[%s169 + $0x28] sm:$0xff]
      %v184 = vld [vmem:[%s169 + $0x30] sm:$0xff]
      %v185 = vld [vmem:[%s169 + $0x38] sm:$0xff]
      %v186 = vld [vmem:[%s169 + $0x40] sm:$0xff]
      %v187 = vld [vmem:[%s169 + $0x48] sm:$0xff]
      %v188 = vld [vmem:[%s169 + $0x50] sm:$0xff]
      %v189 = vld [vmem:[%s169 + $0x58] sm:$0xff]
      %v190 = vld [vmem:[%s169 + $0x60] sm:$0xff]
      %v191 = vld [vmem:[%s169 + $0x68] sm:$0xff]
      %v192 = vld [vmem:[%s169 + $0x70] sm:$0xff]
      %v193 = vld [vmem:[%s169 + $0x78] sm:$0xff]
      %v194 = vld [vmem:[%s169 + $0x80] sm:$0xff]
      %v195 = vld [vmem:[%s169 + $0x88] sm:$0xff]
      %v196 = vld [vmem:[%s169 + $0x90] sm:$0xff]
      %v197 = vld [vmem:[%s169 + $0x98] sm:$0xff]
      %v198 = vld [vmem:[%s169 + $0xa0] sm:$0xff]
      %v199 = vld [vmem:[%s169 + $0xa8] sm:$0xff]
      %v200 = vld [vmem:[%s169 + $0xb0] sm:$0xff]
      %v201 = vld [vmem:[%s169 + $0xb8] sm:$0xff]
      %v202 = vld [vmem:[%s169 + $0xc0] sm:$0xff]
      %v203 = vld [vmem:[%s169 + $0xc8] sm:$0xff]
      %v204 = vld [vmem:[%s169 + $0xd0] sm:$0xff]
      %v205 = vld [vmem:[%s169 + $0xd8] sm:$0xff]
      %v206 = vld [vmem:[%s169 + $0xe0] sm:$0xff]
      %v207 = vld [vmem:[%s169 + $0xe8] sm:$0xff]
      %v208 = vld [vmem:[%s169 + $0xf0] sm:$0xff]
      %v209 = vld [vmem:[%s169 + $0xf8] sm:$0xff]
      %v210 = vld [vmem:[%s169 + $0x100] sm:$0xff]
      %v211 = vld [vmem:[%s169 + $0x108] sm:$0xff]
      %v212 = vld [vmem:[%s169 + $0x110] sm:$0xff]
      %v213 = vld [vmem:[%s169 + $0x118] sm:$0xff]
      %v214 = vld [vmem:[%s169 + $0x120] sm:$0xff]
      %v215 = vld [vmem:[%s1] sm:$0xf]
      %v216 = vld [vmem:[%s1 + $0x4] sm:$0xf]
      %v217 = vld [vmem:[%s1 + $0x8] sm:$0xf]
      %v218 = vld [vmem:[%s1 + $0xc] sm:$0xf]
      %v219 = vld [vmem:[%s1 + $0x10] sm:$0xf]
      %v220 = vld [vmem:[%s1 + $0x14] sm:$0xf]
      %v221 = vld [vmem:[%s1 + $0x18] sm:$0xf]
      %v222 = vld [vmem:[%s1 + $0x1c] sm:$0xf]
      %v223 = vld [vmem:[%s1 + $0x20] sm:$0xf]
      %v224 = vld [vmem:[%s1 + $0x24] sm:$0xf]
      %v225 = vld [vmem:[%s1 + $0x28] sm:$0xf]
      %v226 = vld [vmem:[%s1 + $0x2c] sm:$0xf]
      %v227 = vld [vmem:[%s1 + $0x30] sm:$0xf]
      %v228 = vld [vmem:[%s1 + $0x34] sm:$0xf]
      %v229 = vld [vmem:[%s1 + $0x38] sm:$0xf]
      %v230 = vld [vmem:[%s1 + $0x3c] sm:$0xf]
      %v231 = vld [vmem:[%s1 + $0x40] sm:$0xf]
      %v232 = vld [vmem:[%s1 + $0x44] sm:$0xf]
      %v233 = vld [vmem:[%s1 + $0x48] sm:$0xf]
      %v234 = vld [vmem:[%s1 + $0x4c] sm:$0xf]
      %v235 = vld [vmem:[%s1 + $0x50] sm:$0xf]
      %v236 = vld [vmem:[%s1 + $0x54] sm:$0xf]
      %v237 = vld [vmem:[%s1 + $0x58] sm:$0xf]
      %v238 = vld [vmem:[%s1 + $0x5c] sm:$0xf]
      %v239 = vld [vmem:[%s1 + $0x60] sm:$0xf]
      %v240 = vld [vmem:[%s1 + $0x64] sm:$0xf]
      %v241 = vld [vmem:[%s1 + $0x68] sm:$0xf]
      %v242 = vld [vmem:[%s1 + $0x6c] sm:$0xf]
      %v243 = vld [vmem:[%s1 + $0x70] sm:$0xf]
      %v244 = vld [vmem:[%s1 + $0x74] sm:$0xf]
      %v245 = vld [vmem:[%s1 + $0x78] sm:$0xf]
      %v246 = vld [vmem:[%s1 + $0x7c] sm:$0xf]
      %v247 = vld [vmem:[%s2] sm:$0x1]
      %v249 = vlaneseq
      %v250 = vshrl.u32 %v249, 7
      %v251 = vsub.s32 0, %v250
      %v252 = vrot.slane %v247, %v251
      %v291 = vunpack.c.l.b16 %v178
      %v292 = vunpack.c.h.b16 %v178
      %v293 = vunpack.c.l.b16 %v179
      %v294 = vunpack.c.h.b16 %v179
      %v295 = vunpack.c.l.b16 %v180
      %v296 = vunpack.c.h.b16 %v180
      %v297 = vunpack.c.l.b16 %v181
      %v298 = vunpack.c.h.b16 %v181
      %v299 = vunpack.c.l.b16 %v182
      %v300 = vunpack.c.h.b16 %v182
      %v301 = vunpack.c.l.b16 %v183
      %v302 = vunpack.c.h.b16 %v183
      %v303 = vunpack.c.l.b16 %v184
      %v304 = vunpack.c.h.b16 %v184
      %v305 = vunpack.c.l.b16 %v185
      %v306 = vunpack.c.h.b16 %v185
      %v307 = vunpack.c.l.b16 %v186
      %v308 = vunpack.c.h.b16 %v186
      %v309 = vunpack.c.l.b16 %v187
      %v310 = vunpack.c.h.b16 %v187
      %v311 = vunpack.c.l.b16 %v188
      %v312 = vunpack.c.h.b16 %v188
      %v313 = vunpack.c.l.b16 %v189
      %v314 = vunpack.c.h.b16 %v189
      %v315 = vunpack.c.l.b16 %v190
      %v316 = vunpack.c.h.b16 %v190
      %v317 = vunpack.c.l.b16 %v191
      %v318 = vunpack.c.h.b16 %v191
      %v319 = vunpack.c.l.b16 %v192
      %v320 = vunpack.c.h.b16 %v192
      %v321 = vunpack.c.l.b16 %v193
      %v322 = vunpack.c.h.b16 %v193
      %v323 = vunpack.c.l.b16 %v194
      %v324 = vunpack.c.h.b16 %v194
      %v325 = vunpack.c.l.b16 %v195
      %v326 = vunpack.c.h.b16 %v195
      %v327 = vunpack.c.l.b16 %v196
      %v328 = vunpack.c.h.b16 %v196
      %v329 = vunpack.c.l.b16 %v197
      %v330 = vunpack.c.h.b16 %v197
      %v331 = vunpack.c.l.b16 %v198
      %v332 = vunpack.c.h.b16 %v198
      %v333 = vunpack.c.l.b16 %v199
      %v334 = vunpack.c.h.b16 %v199
      %v335 = vunpack.c.l.b16 %v200
      %v336 = vunpack.c.h.b16 %v200
      %v337 = vunpack.c.l.b16 %v201
      %v338 = vunpack.c.h.b16 %v201
      %v339 = vunpack.c.l.b16 %v202
      %v340 = vunpack.c.h.b16 %v202
      %v341 = vunpack.c.l.b16 %v203
      %v342 = vunpack.c.h.b16 %v203
      %v343 = vunpack.c.l.b16 %v204
      %v344 = vunpack.c.h.b16 %v204
      %v345 = vunpack.c.l.b16 %v205
      %v346 = vunpack.c.h.b16 %v205
      %v347 = vunpack.c.l.b16 %v206
      %v348 = vunpack.c.h.b16 %v206
      %v349 = vunpack.c.l.b16 %v207
      %v350 = vunpack.c.h.b16 %v207
      %v351 = vunpack.c.l.b16 %v208
      %v352 = vunpack.c.h.b16 %v208
      %v353 = vunpack.c.l.b16 %v209
      %v354 = vunpack.c.h.b16 %v209
      %v355 = vunpack.c.l.b16 %v210
      %v356 = vunpack.c.h.b16 %v210
      %v357 = vunpack.c.l.b16 %v211
      %v358 = vunpack.c.h.b16 %v211
      %v359 = vunpack.c.l.b16 %v212
      %v360 = vunpack.c.h.b16 %v212
      %v361 = vunpack.c.l.b16 %v213
      %v362 = vunpack.c.h.b16 %v213
      %v363 = vunpack.c.l.b16 %v214
      %v364 = vunpack.c.h.b16 %v214
      %v365 = vpack.c.b16 %v293, %v291
      %v366 = vpack.c.b16 %v294, %v292
      %v367 = vpack.c.b16 %v297, %v295
      %v368 = vpack.c.b16 %v298, %v296
      %v369 = vpack.c.b16 %v301, %v299
      %v370 = vpack.c.b16 %v302, %v300
      %v371 = vpack.c.b16 %v305, %v303
      %v372 = vpack.c.b16 %v306, %v304
      %v373 = vpack.c.b16 %v309, %v307
      %v374 = vpack.c.b16 %v310, %v308
      %v375 = vpack.c.b16 %v313, %v311
      %v376 = vpack.c.b16 %v314, %v312
      %v377 = vpack.c.b16 %v317, %v315
      %v378 = vpack.c.b16 %v318, %v316
      %v379 = vpack.c.b16 %v321, %v319
      %v380 = vpack.c.b16 %v322, %v320
      %v381 = vpack.c.b16 %v325, %v323
      %v382 = vpack.c.b16 %v326, %v324
      %v383 = vpack.c.b16 %v329, %v327
      %v384 = vpack.c.b16 %v330, %v328
      %v385 = vpack.c.b16 %v333, %v331
      %v386 = vpack.c.b16 %v334, %v332
      %v387 = vpack.c.b16 %v337, %v335
      %v388 = vpack.c.b16 %v338, %v336
      %v389 = vpack.c.b16 %v341, %v339
      %v390 = vpack.c.b16 %v342, %v340
      %v391 = vpack.c.b16 %v345, %v343
      %v392 = vpack.c.b16 %v346, %v344
      %v393 = vpack.c.b16 %v349, %v347
      %v394 = vpack.c.b16 %v350, %v348
      %v395 = vpack.c.b16 %v353, %v351
      %v396 = vpack.c.b16 %v354, %v352
      %v397 = vpack.c.b16 %v357, %v355
      %v398 = vpack.c.b16 %v358, %v356
      %v399 = vpack.c.b16 %v361, %v359
      %v400 = vpack.c.b16 %v362, %v360
      %v401 = vpack.c.b16 %v363, %v363
      %v402 = vpack.c.b16 %v364, %v364
      %v473 = vunpack.c.l.b16 %v215
      %v474 = vunpack.c.l.b16 %v216
      %v475 = vunpack.c.l.b16 %v217
      %v476 = vunpack.c.l.b16 %v218
      %v477 = vunpack.c.l.b16 %v219
      %v478 = vunpack.c.l.b16 %v220
      %v479 = vunpack.c.l.b16 %v221
      %v480 = vunpack.c.l.b16 %v222
      %v481 = vunpack.c.l.b16 %v223
      %v482 = vunpack.c.l.b16 %v224
      %v483 = vunpack.c.l.b16 %v225
      %v484 = vunpack.c.l.b16 %v226
      %v485 = vunpack.c.l.b16 %v227
      %v486 = vunpack.c.l.b16 %v228
      %v487 = vunpack.c.l.b16 %v229
      %v488 = vunpack.c.l.b16 %v230
      %v489 = vunpack.c.l.b16 %v231
      %v490 = vunpack.c.l.b16 %v232
      %v491 = vunpack.c.l.b16 %v233
      %v492 = vunpack.c.l.b16 %v234
      %v493 = vunpack.c.l.b16 %v235
      %v494 = vunpack.c.l.b16 %v236
      %v495 = vunpack.c.l.b16 %v237
      %v496 = vunpack.c.l.b16 %v238
      %v497 = vunpack.c.l.b16 %v239
      %v498 = vunpack.c.l.b16 %v240
      %v499 = vunpack.c.l.b16 %v241
      %v500 = vunpack.c.l.b16 %v242
      %v501 = vunpack.c.l.b16 %v243
      %v502 = vunpack.c.l.b16 %v244
      %v503 = vunpack.c.l.b16 %v245
      %v504 = vunpack.c.l.b16 %v246
      %v505 = vpack.c.b16 %v474, %v473
      %v506 = vpack.c.b16 %v476, %v475
      %v507 = vpack.c.b16 %v478, %v477
      %v508 = vpack.c.b16 %v480, %v479
      %v509 = vpack.c.b16 %v482, %v481
      %v510 = vpack.c.b16 %v484, %v483
      %v511 = vpack.c.b16 %v486, %v485
      %v512 = vpack.c.b16 %v488, %v487
      %v513 = vpack.c.b16 %v490, %v489
      %v514 = vpack.c.b16 %v492, %v491
      %v515 = vpack.c.b16 %v494, %v493
      %v516 = vpack.c.b16 %v496, %v495
      %v517 = vpack.c.b16 %v498, %v497
      %v518 = vpack.c.b16 %v500, %v499
      %v519 = vpack.c.b16 %v502, %v501
      %v520 = vpack.c.b16 %v504, %v503
      %537 = vmatprep.subr.bf16.mxu0 0
      %538 = vmatpush1.bf16.msra.mxu0 %v505
      %539 = vmatprep.subr.bf16.mxu0 0
      %540 = vmatpush1.bf16.msra.mxu0 %v506
      %541 = vmatprep.subr.bf16.mxu0 0
      %542 = vmatpush1.bf16.msra.mxu0 %v507
      %543 = vmatprep.subr.bf16.mxu0 0
      %544 = vmatpush1.bf16.msra.mxu0 %v508
      %545 = vmatprep.subr.bf16.mxu0 0
      %546 = vmatpush1.bf16.msra.mxu0 %v509
      %547 = vmatprep.subr.bf16.mxu0 0
      %548 = vmatpush1.bf16.msra.mxu0 %v510
      %549 = vmatprep.subr.bf16.mxu0 0
      %550 = vmatpush1.bf16.msra.mxu0 %v511
      %551 = vmatprep.subr.bf16.mxu0 0
      %552 = vmatpush1.bf16.msra.mxu0 %v512
      %553 = vmatprep.subr.bf16.mxu0 0
      %554 = vmatpush1.bf16.msra.mxu0 %v513
      %555 = vmatprep.subr.bf16.mxu0 0
      %556 = vmatpush1.bf16.msra.mxu0 %v514
      %557 = vmatprep.subr.bf16.mxu0 0
      %558 = vmatpush1.bf16.msra.mxu0 %v515
      %559 = vmatprep.subr.bf16.mxu0 0
      %560 = vmatpush1.bf16.msra.mxu0 %v516
      %561 = vmatprep.subr.bf16.mxu0 0
      %562 = vmatpush1.bf16.msra.mxu0 %v517
      %563 = vmatprep.subr.bf16.mxu0 0
      %564 = vmatpush1.bf16.msra.mxu0 %v518
      %565 = vmatprep.subr.bf16.mxu0 0
      %566 = vmatpush1.bf16.msra.mxu0 %v519
      %567 = vmatprep.subr.bf16.mxu0 0
      %568 = vmatpush1.bf16.msra.mxu0 %v520
      %569 = vmatprep.mubr.bf16.mxu0 %v366
      %570 = vmatmul.mubr.bf16.gmra.mrb[0].mxu0 %v365
      %v571 = vpop.f32.mrb[0].mxu0
      %v572 = vadd.f32 %v252, %v571
      %v573 = vpop.f32.mrb[0].mxu0
      %v574 = vpop.f32.mrb[0].mxu0
      %v575 = vadd.f32 %v252, %v574
      %v576 = vpop.f32.mrb[0].mxu0
      %577 = vmatprep.mubr.bf16.mxu0 %v368
      %578 = vmatmul.mubr.bf16.gmra.mrb[0].mxu0 %v367
      %v579 = vpop.f32.mrb[0].mxu0
      %v580 = vadd.f32 %v252, %v579
      %v581 = vpop.f32.mrb[0].mxu0
      %v582 = vpop.f32.mrb[0].mxu0
      %v583 = vadd.f32 %v252, %v582
      %v584 = vpop.f32.mrb[0].mxu0
      %585 = vmatprep.mubr.bf16.mxu0 %v370
      %586 = vmatmul.mubr.bf16.gmra.mrb[0].mxu0 %v369
      %v587 = vpop.f32.mrb[0].mxu0
      %v588 = vadd.f32 %v252, %v587
      %v589 = vpop.f32.mrb[0].mxu0
      %v590 = vpop.f32.mrb[0].mxu0
      %v591 = vadd.f32 %v252, %v590
      %v592 = vpop.f32.mrb[0].mxu0
      %593 = vmatprep.mubr.bf16.mxu0 %v372
      %594 = vmatmul.mubr.bf16.gmra.mrb[0].mxu0 %v371
      %v595 = vpop.f32.mrb[0].mxu0
      %v596 = vadd.f32 %v252, %v595
      %v597 = vpop.f32.mrb[0].mxu0
      %v598 = vpop.f32.mrb[0].mxu0
      %v599 = vadd.f32 %v252, %v598
      %v600 = vpop.f32.mrb[0].mxu0
      %601 = vmatprep.mubr.bf16.mxu0 %v374
      %602 = vmatmul.mubr.bf16.gmra.mrb[0].mxu0 %v373
      %v603 = vpop.f32.mrb[0].mxu0
      %v604 = vadd.f32 %v252, %v603
      %v605 = vpop.f32.mrb[0].mxu0
      %v606 = vpop.f32.mrb[0].mxu0
      %v607 = vadd.f32 %v252, %v606
      %v608 = vpop.f32.mrb[0].mxu0
      %609 = vmatprep.mubr.bf16.mxu0 %v376
      %610 = vmatmul.mubr.bf16.gmra.mrb[0].mxu0 %v375
      %v611 = vpop.f32.mrb[0].mxu0
      %v612 = vadd.f32 %v252, %v611
      %v613 = vpop.f32.mrb[0].mxu0
      %v614 = vpop.f32.mrb[0].mxu0
      %v615 = vadd.f32 %v252, %v614
      %v616 = vpop.f32.mrb[0].mxu0
      %617 = vmatprep.mubr.bf16.mxu0 %v378
      %618 = vmatmul.mubr.bf16.gmra.mrb[0].mxu0 %v377
      %v619 = vpop.f32.mrb[0].mxu0
      %v620 = vadd.f32 %v252, %v619
      %v621 = vpop.f32.mrb[0].mxu0
      %v622 = vpop.f32.mrb[0].mxu0
      %v623 = vadd.f32 %v252, %v622
      %v624 = vpop.f32.mrb[0].mxu0
      %625 = vmatprep.mubr.bf16.mxu0 %v380
      %626 = vmatmul.mubr.bf16.gmra.mrb[0].mxu0 %v379
      %v627 = vpop.f32.mrb[0].mxu0
      %v628 = vadd.f32 %v252, %v627
      %v629 = vpop.f32.mrb[0].mxu0
      %v630 = vpop.f32.mrb[0].mxu0
      %v631 = vadd.f32 %v252, %v630
      %v632 = vpop.f32.mrb[0].mxu0
      %633 = vmatprep.mubr.bf16.mxu0 %v382
      %634 = vmatmul.mubr.bf16.gmra.mrb[0].mxu0 %v381
      %v635 = vpop.f32.mrb[0].mxu0
      %v636 = vadd.f32 %v252, %v635
      %v637 = vpop.f32.mrb[0].mxu0
      %v638 = vpop.f32.mrb[0].mxu0
      %v639 = vadd.f32 %v252, %v638
      %v640 = vpop.f32.mrb[0].mxu0
      %641 = vmatprep.mubr.bf16.mxu0 %v384
      %642 = vmatmul.mubr.bf16.gmra.mrb[0].mxu0 %v383
      %v643 = vpop.f32.mrb[0].mxu0
      %v644 = vadd.f32 %v252, %v643
      %v645 = vpop.f32.mrb[0].mxu0
      %v646 = vpop.f32.mrb[0].mxu0
      %v647 = vadd.f32 %v252, %v646
      %v648 = vpop.f32.mrb[0].mxu0
      %649 = vmatprep.mubr.bf16.mxu0 %v386
      %650 = vmatmul.mubr.bf16.gmra.mrb[0].mxu0 %v385
      %v651 = vpop.f32.mrb[0].mxu0
      %v652 = vadd.f32 %v252, %v651
      %v653 = vpop.f32.mrb[0].mxu0
      %v654 = vpop.f32.mrb[0].mxu0
      %v655 = vadd.f32 %v252, %v654
      %v656 = vpop.f32.mrb[0].mxu0
      %657 = vmatprep.mubr.bf16.mxu0 %v388
      %658 = vmatmul.mubr.bf16.gmra.mrb[0].mxu0 %v387
      %v659 = vpop.f32.mrb[0].mxu0
      %v660 = vadd.f32 %v252, %v659
      %v661 = vpop.f32.mrb[0].mxu0
      %v662 = vpop.f32.mrb[0].mxu0
      %v663 = vadd.f32 %v252, %v662
      %v664 = vpop.f32.mrb[0].mxu0
      %665 = vmatprep.mubr.bf16.mxu0 %v390
      %666 = vmatmul.mubr.bf16.gmra.mrb[0].mxu0 %v389
      %v667 = vpop.f32.mrb[0].mxu0
      %v668 = vadd.f32 %v252, %v667
      %v669 = vpop.f32.mrb[0].mxu0
      %v670 = vpop.f32.mrb[0].mxu0
      %v671 = vadd.f32 %v252, %v670
      %v672 = vpop.f32.mrb[0].mxu0
      %673 = vmatprep.mubr.bf16.mxu0 %v392
      %674 = vmatmul.mubr.bf16.gmra.mrb[0].mxu0 %v391
      %v675 = vpop.f32.mrb[0].mxu0
      %v676 = vadd.f32 %v252, %v675
      %v677 = vpop.f32.mrb[0].mxu0
      %v678 = vpop.f32.mrb[0].mxu0
      %v679 = vadd.f32 %v252, %v678
      %v680 = vpop.f32.mrb[0].mxu0
      %681 = vmatprep.mubr.bf16.mxu0 %v394
      %682 = vmatmul.mubr.bf16.gmra.mrb[0].mxu0 %v393
      %v683 = vpop.f32.mrb[0].mxu0
      %v684 = vadd.f32 %v252, %v683
      %v685 = vpop.f32.mrb[0].mxu0
      %v686 = vpop.f32.mrb[0].mxu0
      %v687 = vadd.f32 %v252, %v686
      %v688 = vpop.f32.mrb[0].mxu0
      %689 = vmatprep.mubr.bf16.mxu0 %v396
      %690 = vmatmul.mubr.bf16.gmra.mrb[0].mxu0 %v395
      %v691 = vpop.f32.mrb[0].mxu0
      %v692 = vadd.f32 %v252, %v691
      %v693 = vpop.f32.mrb[0].mxu0
      %v694 = vpop.f32.mrb[0].mxu0
      %v695 = vadd.f32 %v252, %v694
      %v696 = vpop.f32.mrb[0].mxu0
      %697 = vmatprep.mubr.bf16.mxu0 %v398
      %698 = vmatmul.mubr.bf16.gmra.mrb[0].mxu0 %v397
      %v699 = vpop.f32.mrb[0].mxu0
      %v700 = vadd.f32 %v252, %v699
      %v701 = vpop.f32.mrb[0].mxu0
      %v702 = vpop.f32.mrb[0].mxu0
      %v703 = vadd.f32 %v252, %v702
      %v704 = vpop.f32.mrb[0].mxu0
      %705 = vmatprep.mubr.bf16.mxu0 %v400
      %706 = vmatmul.mubr.bf16.gmra.mrb[0].mxu0 %v399
      %v707 = vpop.f32.mrb[0].mxu0
      %v708 = vadd.f32 %v252, %v707
      %v709 = vpop.f32.mrb[0].mxu0
      %v710 = vpop.f32.mrb[0].mxu0
      %v711 = vadd.f32 %v252, %v710
      %v712 = vpop.f32.mrb[0].mxu0
      %713 = vmatprep.mubr.bf16.mxu0 %v402
      %714 = vmatmul.mubr.bf16.gmra.mrb[0].mxu0 %v401
      %v715 = vpop.f32.mrb[0].mxu0
      %v716 = vadd.f32 %v252, %v715
      %v717 = vpop.f32.mrb[0].mxu0
      %v718 = vpop.f32.mrb[0].mxu0
      %v719 = vpop.f32.mrb[0].mxu0
      %720 = vdwg.mxu0
      %v721 = vmax.f32 %v572, 0.0
      %v722 = vmax.f32 %v575, 0.0
      %v723 = vmax.f32 %v580, 0.0
      %v724 = vmax.f32 %v583, 0.0
      %v725 = vmax.f32 %v588, 0.0
      %v726 = vmax.f32 %v591, 0.0
      %v727 = vmax.f32 %v596, 0.0
      %v728 = vmax.f32 %v599, 0.0
      %v729 = vmax.f32 %v604, 0.0
      %v730 = vmax.f32 %v607, 0.0
      %v731 = vmax.f32 %v612, 0.0
      %v732 = vmax.f32 %v615, 0.0
      %v733 = vmax.f32 %v620, 0.0
      %v734 = vmax.f32 %v623, 0.0
      %v735 = vmax.f32 %v628, 0.0
      %v736 = vmax.f32 %v631, 0.0
      %v737 = vmax.f32 %v636, 0.0
      %v738 = vmax.f32 %v639, 0.0
      %v739 = vmax.f32 %v644, 0.0
      %v740 = vmax.f32 %v647, 0.0
      %v741 = vmax.f32 %v652, 0.0
      %v742 = vmax.f32 %v655, 0.0
      %v743 = vmax.f32 %v660, 0.0
      %v744 = vmax.f32 %v663, 0.0
      %v745 = vmax.f32 %v668, 0.0
      %v746 = vmax.f32 %v671, 0.0
      %v747 = vmax.f32 %v676, 0.0
      %v748 = vmax.f32 %v679, 0.0
      %v749 = vmax.f32 %v684, 0.0
      %v750 = vmax.f32 %v687, 0.0
      %v751 = vmax.f32 %v692, 0.0
      %v752 = vmax.f32 %v695, 0.0
      %v753 = vmax.f32 %v700, 0.0
      %v754 = vmax.f32 %v703, 0.0
      %v755 = vmax.f32 %v708, 0.0
      %v756 = vmax.f32 %v711, 0.0
      %v757 = vmax.f32 %v716, 0.0
      %v758 = vpack.c.bf16 %v722, %v721
      %v759 = vpack.c.bf16 %v724, %v723
      %v760 = vpack.c.bf16 %v726, %v725
      %v761 = vpack.c.bf16 %v728, %v727
      %v762 = vpack.c.bf16 %v730, %v729
      %v763 = vpack.c.bf16 %v732, %v731
      %v764 = vpack.c.bf16 %v734, %v733
      %v765 = vpack.c.bf16 %v736, %v735
      %v766 = vpack.c.bf16 %v738, %v737
      %v767 = vpack.c.bf16 %v740, %v739
      %v768 = vpack.c.bf16 %v742, %v741
      %v769 = vpack.c.bf16 %v744, %v743
      %v770 = vpack.c.bf16 %v746, %v745
      %v771 = vpack.c.bf16 %v748, %v747
      %v772 = vpack.c.bf16 %v750, %v749
      %v773 = vpack.c.bf16 %v752, %v751
      %v774 = vpack.c.bf16 %v754, %v753
      %v775 = vpack.c.bf16 %v756, %v755
      %v776 = vpack.c.bf16 %v757, %v757
      %v796 = vunpack.c.l.b16 %v758
      %v797 = vunpack.c.h.b16 %v758
      %v798 = vunpack.c.l.b16 %v759
      %v799 = vunpack.c.h.b16 %v759
      %v800 = vunpack.c.l.b16 %v760
      %v801 = vunpack.c.h.b16 %v760
      %v802 = vunpack.c.l.b16 %v761
      %v803 = vunpack.c.h.b16 %v761
      %v804 = vunpack.c.l.b16 %v762
      %v805 = vunpack.c.h.b16 %v762
      %v806 = vunpack.c.l.b16 %v763
      %v807 = vunpack.c.h.b16 %v763
      %v808 = vunpack.c.l.b16 %v764
      %v809 = vunpack.c.h.b16 %v764
      %v810 = vunpack.c.l.b16 %v765
      %v811 = vunpack.c.h.b16 %v765
      %v812 = vunpack.c.l.b16 %v766
      %v813 = vunpack.c.h.b16 %v766
      %v814 = vunpack.c.l.b16 %v767
      %v815 = vunpack.c.h.b16 %v767
      %v816 = vunpack.c.l.b16 %v768
      %v817 = vunpack.c.h.b16 %v768
      %v818 = vunpack.c.l.b16 %v769
      %v819 = vunpack.c.h.b16 %v769
      %v820 = vunpack.c.l.b16 %v770
      %v821 = vunpack.c.h.b16 %v770
      %v822 = vunpack.c.l.b16 %v771
      %v823 = vunpack.c.h.b16 %v771
      %v824 = vunpack.c.l.b16 %v772
      %v825 = vunpack.c.h.b16 %v772
      %v826 = vunpack.c.l.b16 %v773
      %v827 = vunpack.c.h.b16 %v773
      %v828 = vunpack.c.l.b16 %v774
      %v829 = vunpack.c.h.b16 %v774
      %v830 = vunpack.c.l.b16 %v775
      %v831 = vunpack.c.h.b16 %v775
      %v832 = vunpack.c.l.b16 %v776
      %v833 = vpack.c.b16 %v796, %v796
      %v834 = vpack.c.b16 %v797, %v797
      %v835 = vpack.c.b16 %v798, %v798
      %v836 = vpack.c.b16 %v799, %v799
      %v837 = vpack.c.b16 %v800, %v800
      %v838 = vpack.c.b16 %v801, %v801
      %v839 = vpack.c.b16 %v802, %v802
      %v840 = vpack.c.b16 %v803, %v803
      %v841 = vpack.c.b16 %v804, %v804
      %v842 = vpack.c.b16 %v805, %v805
      %v843 = vpack.c.b16 %v806, %v806
      %v844 = vpack.c.b16 %v807, %v807
      %v845 = vpack.c.b16 %v808, %v808
      %v846 = vpack.c.b16 %v809, %v809
      %v847 = vpack.c.b16 %v810, %v810
      %v848 = vpack.c.b16 %v811, %v811
      %v849 = vpack.c.b16 %v812, %v812
      %v850 = vpack.c.b16 %v813, %v813
      %v851 = vpack.c.b16 %v814, %v814
      %v852 = vpack.c.b16 %v815, %v815
      %v853 = vpack.c.b16 %v816, %v816
      %v854 = vpack.c.b16 %v817, %v817
      %v855 = vpack.c.b16 %v818, %v818
      %v856 = vpack.c.b16 %v819, %v819
      %v857 = vpack.c.b16 %v820, %v820
      %v858 = vpack.c.b16 %v821, %v821
      %v859 = vpack.c.b16 %v822, %v822
      %v860 = vpack.c.b16 %v823, %v823
      %v861 = vpack.c.b16 %v824, %v824
      %v862 = vpack.c.b16 %v825, %v825
      %v863 = vpack.c.b16 %v826, %v826
      %v864 = vpack.c.b16 %v827, %v827
      %v865 = vpack.c.b16 %v828, %v828
      %v866 = vpack.c.b16 %v829, %v829
      %v867 = vpack.c.b16 %v830, %v830
      %v868 = vpack.c.b16 %v831, %v831
      %v869 = vpack.c.b16 %v832, %v832
      %907 = vst [vmem:[%s175] sm:$0xf] %v833
      %908 = vst [vmem:[%s175 + $0x4] sm:$0xf] %v834
      %909 = vst [vmem:[%s175 + $0x8] sm:$0xf] %v835
      %910 = vst [vmem:[%s175 + $0xc] sm:$0xf] %v836
      %911 = vst [vmem:[%s175 + $0x10] sm:$0xf] %v837
      %912 = vst [vmem:[%s175 + $0x14] sm:$0xf] %v838
      %913 = vst [vmem:[%s175 + $0x18] sm:$0xf] %v839
      %914 = vst [vmem:[%s175 + $0x1c] sm:$0xf] %v840
      %915 = vst [vmem:[%s175 + $0x20] sm:$0xf] %v841
      %916 = vst [vmem:[%s175 + $0x24] sm:$0xf] %v842
      %917 = vst [vmem:[%s175 + $0x28] sm:$0xf] %v843
      %918 = vst [vmem:[%s175 + $0x2c] sm:$0xf] %v844
      %919 = vst [vmem:[%s175 + $0x30] sm:$0xf] %v845
      %920 = vst [vmem:[%s175 + $0x34] sm:$0xf] %v846
      %921 = vst [vmem:[%s175 + $0x38] sm:$0xf] %v847
      %922 = vst [vmem:[%s175 + $0x3c] sm:$0xf] %v848
      %923 = vst [vmem:[%s175 + $0x40] sm:$0xf] %v849
      %924 = vst [vmem:[%s175 + $0x44] sm:$0xf] %v850
      %925 = vst [vmem:[%s175 + $0x48] sm:$0xf] %v851
      %926 = vst [vmem:[%s175 + $0x4c] sm:$0xf] %v852
      %927 = vst [vmem:[%s175 + $0x50] sm:$0xf] %v853
      %928 = vst [vmem:[%s175 + $0x54] sm:$0xf] %v854
      %929 = vst [vmem:[%s175 + $0x58] sm:$0xf] %v855
      %930 = vst [vmem:[%s175 + $0x5c] sm:$0xf] %v856
      %931 = vst [vmem:[%s175 + $0x60] sm:$0xf] %v857
      %932 = vst [vmem:[%s175 + $0x64] sm:$0xf] %v858
      %933 = vst [vmem:[%s175 + $0x68] sm:$0xf] %v859
      %934 = vst [vmem:[%s175 + $0x6c] sm:$0xf] %v860
      %935 = vst [vmem:[%s175 + $0x70] sm:$0xf] %v861
      %936 = vst [vmem:[%s175 + $0x74] sm:$0xf] %v862
      %937 = vst [vmem:[%s175 + $0x78] sm:$0xf] %v863
      %938 = vst [vmem:[%s175 + $0x7c] sm:$0xf] %v864
      %939 = vst [vmem:[%s175 + $0x80] sm:$0xf] %v865
      %940 = vst [vmem:[%s175 + $0x84] sm:$0xf] %v866
      %941 = vst [vmem:[%s175 + $0x88] sm:$0xf] %v867
      %942 = vst [vmem:[%s175 + $0x8c] sm:$0xf] %v868
      %943 = vst [vmem:[%s175 + $0x90] sm:$0xf] %v869
      %s944 = smul.u32 37, %s14
      %p945 = scmp.lt.s32.totalorder %s944, 73
      %s946 = scalar_select %p945, %s944, 73
      %s947 = smul.addr %s946, 4
      %s948 = scalar_lea.vmem %s3, %s947
      // Predicated region
      $region33: #{decoder_forward.4} parent=31 // pred_check
        %p949 = pneg %p100
      $region34: #{decoder_forward.4} parent=31 // pred_check_branch
        %951 = sbr.rel (%p949) target = $region36
      $region35: #{decoder_forward.4} parent=31 // pred_region
        %s952 = smul.u32 37, %s14
      $region36: #{decoder_forward.4} parent=31 // pred_fallthru
        _
    $region32: #{decoder_forward.4} parent=5 // pred_fallthru
      _
    %p953 = scmp.le.s32.totalorder 2, %s9
    // Predicated region
    $region37: #{decoder_forward.4} parent=5 // pred_check
      %p954 = pneg %p953
    $region38: #{decoder_forward.4} parent=5 // pred_check_branch
      %956 = sbr.rel (%p954) target = $region40
    $region39: #{decoder_forward.4} parent=5 // pred_region
      %s957 = ssub.s32 %s9, 2
      // Predicated region
      $region41: #{decoder_forward.4} parent=39 // pred_check
        %p958 = pneg %p106
      $region42: #{decoder_forward.4} parent=39 // pred_check_branch
        %960 = sbr.rel (%p958) target = $region44
      $region43: #{decoder_forward.4} parent=39 // pred_region
        %s961 = smul.u32 37, %s15
        %p962 = scmp.lt.s32.totalorder %s961, 73
        %s963 = scalar_select %p962, %s961, 73
        %s964 = smul.addr %s963, 4
        %s965 = scalar_lea.vmem %s3, %s964
      $region44: #{decoder_forward.4} parent=39 // pred_fallthru
        _
    $region40: #{decoder_forward.4} parent=5 // pred_fallthru
      _
  $region6: #{decoder_forward.4} parent=0 // loop_footer
    %s13 = sadd.s32 1, %s9
  $region7: #{decoder_forward.4} parent=0 // loop_footer_branch
    %8 = sbr.rel target = $region3
  $region8: #{decoder_forward.4} parent=0 // loop_exit
    _

// kernel: decoder_forward.5
$region0: #{decoder_forward.5}
  #allocation0 [shape = 'u32[]', space=smem, size = 0x4, offset = 0x4, fixed_abs, tag = 'smem constant byte address 0x4 - core index']
  #allocation1 [shape = 'u32[144,128]{1,0:T(1,128)}', space=vmem, size = 0x12000, scoped, tag = 'internal scratch']
  %s0 = inlined_call_operand.vmem [shape: bf16[2200,128], index: 0, kind: input, shape index: {}]
  %s1 = inlined_call_operand.vmem [shape: bf16[128,128], index: 1, kind: input, shape index: {}]
  %s2 = inlined_call_operand.vmem [shape: f32[1,128], index: 2, kind: input, shape index: {}]
  %s3 = inlined_call_operand.vmem [shape: f32[2200,128], index: 3, kind: output, shape index: {}]
  %s4 = sld [smem:[#allocation0]]
  $region45: #{decoder_forward.5} parent=0
    _
  %s6 = ssub.s32 1, %s4
  %s7 = scalar_select 0, %s6, %s4
  loop: start=0, step=1, limit=7
  $region2: #{decoder_forward.5} parent=0 // loop_pre_header
    _
  $region3: #{decoder_forward.5} parent=0 // loop_header
    %s9 = sphi 0, %s13
    %p10 = scmp.ge.s32.totalorder %s9, 7
    %s19 = sphi 0, %s21
    %s22 = sphi 0, %s19
    %s23 = sphi 0, %s22
    %s39 = sphi 0, %s23
    %s43 = sphi 0, %s43
    %s45 = sphi 0, %s43
    %s46 = sphi 0, %s45
    %s60 = sphi 0, %s46
    %s64 = sphi 0, %s64
    %s66 = sphi 0, %s64
    %s67 = sphi 0, %s66
    %s81 = sphi 0, %s67
    %s87 = sphi 0, %s89
    %s90 = sphi 0, %s87
    %s91 = sphi 0, %s90
    %s107 = sphi 0, %s91
  $region4: #{decoder_forward.5} parent=0 // loop_header_branch
    %12 = sbr.rel (%p10) target = $region8
  $region5: #{decoder_forward.5} parent=0 // loop_body
    %s14 = ssub.s32 %s9, 1
    %s15 = ssub.s32 %s9, 2
    %s16 = sadd.s32 %s9, 1
    %s17 = ssub.s32 %s9, %s16
    %p18 = scmp.eq.s32.totalorder %s17, 0
    %s20 = sadd.s32 %s19, 1
    %s21 = scalar_select %p18, %s19, %s20
    %p24 = pneg %p18
    %p25 = scmp.eq.s32.totalorder %s9, 4
    %p26 = por %p24, %p25
    %p27 = scmp.ne.s32.totalorder %s19, %s22
    %p28 = scmp.eq.s32.totalorder %s9, 0
    %p29 = por %p27, %p28
    %p30 = scmp.ne.s32.totalorder %s19, %s22
    %p31 = scmp.eq.s32.totalorder %s14, 4
    %p32 = por %p30, %p31
    %p33 = scmp.ne.s32.totalorder %s22, %s23
    %p34 = scmp.eq.s32.totalorder %s14, 0
    %p35 = por %p33, %p34
    %p36 = scmp.ne.s32.totalorder %s22, %s23
    %p37 = scmp.eq.s32.totalorder %s15, 4
    %p38 = por %p36, %p37
    %p40 = scmp.ne.s32.totalorder %s23, %s39
    %p41 = scmp.eq.s32.totalorder %s15, 0
    %p42 = por %p40, %p41
    %s44 = sadd.s32 %s43, 1
    %p47 = scmp.eq.s32.totalorder %s9, 4
    %p48 = scmp.ne.s32.totalorder %s43, %s45
    %p49 = scmp.eq.s32.totalorder %s9, 0
    %p50 = por %p48, %p49
    %p51 = scmp.ne.s32.totalorder %s43, %s45
    %p52 = scmp.eq.s32.totalorder %s14, 4
    %p53 = por %p51, %p52
    %p54 = scmp.ne.s32.totalorder %s45, %s46
    %p55 = scmp.eq.s32.totalorder %s14, 0
    %p56 = por %p54, %p55
    %p57 = scmp.ne.s32.totalorder %s45, %s46
    %p58 = scmp.eq.s32.totalorder %s15, 4
    %p59 = por %p57, %p58
    %p61 = scmp.ne.s32.totalorder %s46, %s60
    %p62 = scmp.eq.s32.totalorder %s15, 0
    %p63 = por %p61, %p62
    %s65 = sadd.s32 %s64, 1
    %p68 = scmp.eq.s32.totalorder %s9, 4
    %p69 = scmp.ne.s32.totalorder %s64, %s66
    %p70 = scmp.eq.s32.totalorder %s9, 0
    %p71 = por %p69, %p70
    %p72 = scmp.ne.s32.totalorder %s64, %s66
    %p73 = scmp.eq.s32.totalorder %s14, 4
    %p74 = por %p72, %p73
    %p75 = scmp.ne.s32.totalorder %s66, %s67
    %p76 = scmp.eq.s32.totalorder %s14, 0
    %p77 = por %p75, %p76
    %p78 = scmp.ne.s32.totalorder %s66, %s67
    %p79 = scmp.eq.s32.totalorder %s15, 4
    %p80 = por %p78, %p79
    %p82 = scmp.ne.s32.totalorder %s67, %s81
    %p83 = scmp.eq.s32.totalorder %s15, 0
    %p84 = por %p82, %p83
    %s85 = ssub.s32 %s9, %s16
    %p86 = scmp.eq.s32.totalorder %s85, 0
    %s88 = sadd.s32 %s87, 1
    %s89 = scalar_select %p86, %s87, %s88
    %p92 = pneg %p86
    %p93 = scmp.eq.s32.totalorder %s9, 4
    %p94 = por %p92, %p93
    %p95 = scmp.ne.s32.totalorder %s87, %s90
    %p96 = scmp.eq.s32.totalorder %s9, 0
    %p97 = por %p95, %p96
    %p98 = scmp.ne.s32.totalorder %s87, %s90
    %p99 = scmp.eq.s32.totalorder %s14, 4
    %p100 = por %p98, %p99
    %p101 = scmp.ne.s32.totalorder %s90, %s91
    %p102 = scmp.eq.s32.totalorder %s14, 0
    %p103 = por %p101, %p102
    %p104 = scmp.ne.s32.totalorder %s90, %s91
    %p105 = scmp.eq.s32.totalorder %s15, 4
    %p106 = por %p104, %p105
    %p108 = scmp.ne.s32.totalorder %s91, %s107
    %p109 = scmp.eq.s32.totalorder %s15, 0
    %p110 = por %p108, %p109
    %p111 = scmp.le.s32.totalorder 1, %s9
    %p112 = scmp.lt.s32.totalorder %s9, 6
    %p113 = pnand %p111, %p112
    %p114 = pneg %p113
    // Predicated region
    $region9: #{decoder_forward.5} parent=5 // pred_check
      _
    $region10: #{decoder_forward.5} parent=5 // pred_check_branch
      %116 = sbr.rel (%p113) target = $region12
    $region11: #{decoder_forward.5} parent=5 // pred_region
      %s117 = ssub.s32 %s9, 1
      // Predicated region
      $region13: #{decoder_forward.5} parent=11 // pred_check
        %p118 = pneg %p56
      $region14: #{decoder_forward.5} parent=11 // pred_check_branch
        %120 = sbr.rel (%p118) target = $region16
      $region15: #{decoder_forward.5} parent=11 // pred_region
        _
      $region16: #{decoder_forward.5} parent=11 // pred_fallthru
        _
      // Predicated region
      $region17: #{decoder_forward.5} parent=11 // pred_check
        %p121 = pneg %p77
      $region18: #{decoder_forward.5} parent=11 // pred_check_branch
        %123 = sbr.rel (%p121) target = $region20
      $region19: #{decoder_forward.5} parent=11 // pred_region
        _
      $region20: #{decoder_forward.5} parent=11 // pred_fallthru
        _
    $region12: #{decoder_forward.5} parent=5 // pred_fallthru
      _
    %p124 = scmp.lt.s32.totalorder %s9, 5
    // Predicated region
    $region21: #{decoder_forward.5} parent=5 // pred_check
      %p125 = pneg %p124
    $region22: #{decoder_forward.5} parent=5 // pred_check_branch
      %127 = sbr.rel (%p125) target = $region24
    $region23: #{decoder_forward.5} parent=5 // pred_region
      // Predicated region
      $region25: #{decoder_forward.5} parent=23 // pred_check
        %p128 = pneg %p29
      $region26: #{decoder_forward.5} parent=23 // pred_check_branch
        %130 = sbr.rel (%p128) target = $region28
      $region27: #{decoder_forward.5} parent=23 // pred_region
        %s131 = smul.u32 55, %s9
        %p132 = scmp.lt.s32.totalorder %s131, 274
        %s133 = scalar_select %p132, %s131, 274
        %s134 = smul.addr %s133, 4
        %s135 = scalar_lea.vmem %s0, %s134
        %s136 = smul.u32 55, %s9
      $region28: #{decoder_forward.5} parent=23 // pred_fallthru
        _
    $region24: #{decoder_forward.5} parent=5 // pred_fallthru
      _
    %p137 = scmp.le.s32.totalorder 1, %s9
    %p138 = scmp.lt.s32.totalorder %s9, 6
    %p139 = pnand %p137, %p138
    %p140 = pneg %p139
    // Predicated region
    $region29: #{decoder_forward.5} parent=5 // pred_check
      _
    $region30: #{decoder_forward.5} parent=5 // pred_check_branch
      %142 = sbr.rel (%p139) target = $region32
    $region31: #{decoder_forward.5} parent=5 // pred_region
      %s143 = ssub.s32 %s9, 1
      %s144 = smul.u32 55, %s14
      %p145 = scmp.lt.s32.totalorder %s144, 274
      %s146 = scalar_select %p145, %s144, 274
      %s147 = smul.addr %s146, 4
      %s148 = scalar_lea.vmem %s0, %s147
      %p149 = pneg %p35
      %p150 = pneg %p32
      %p151 = pneg %p56
      %p152 = pneg %p53
      %p153 = pneg %p77
      %p154 = pneg %p74
      %p155 = pneg %p103
      %p156 = pneg %p100
      %s157 = smul.u32 55, %s14
      %p158 = scmp.lt.s32.totalorder %s157, 274
      %s159 = scalar_select %p158, %s157, 274
      %s160 = smul.addr %s159, 8
      %s161 = scalar_lea.vmem %s3, %s160
      %s162 = smul.u32 55, %s14
      %p163 = scmp.lt.s32.totalorder %s162, 274
      %s164 = scalar_select %p163, %s162, 274
      %s165 = smul.addr %s164, 4
      %s166 = scalar_lea.vmem %s0, %s165
      %s167 = smul.u32 55, %s14
      %s168 = smul.u32 55, %s14
      %p169 = scmp.lt.s32.totalorder %s168, 274
      %s170 = scalar_select %p169, %s168, 274
      %s171 = smul.addr %s170, 8
      %s172 = scalar_lea.vmem %s3, %s171
      %s173 = smul.u32 55, %s14
      %v175 = vld [vmem:[%s166] sm:$0xf]
      %v176 = vld [vmem:[%s166 + $0x4] sm:$0xf]
      %v177 = vld [vmem:[%s166 + $0x8] sm:$0xf]
      %v178 = vld [vmem:[%s166 + $0xc] sm:$0xf]
      %v179 = vld [vmem:[%s166 + $0x10] sm:$0xf]
      %v180 = vld [vmem:[%s166 + $0x14] sm:$0xf]
      %v181 = vld [vmem:[%s166 + $0x18] sm:$0xf]
      %v182 = vld [vmem:[%s166 + $0x1c] sm:$0xf]
      %v183 = vld [vmem:[%s166 + $0x20] sm:$0xf]
      %v184 = vld [vmem:[%s166 + $0x24] sm:$0xf]
      %v185 = vld [vmem:[%s166 + $0x28] sm:$0xf]
      %v186 = vld [vmem:[%s166 + $0x2c] sm:$0xf]
      %v187 = vld [vmem:[%s166 + $0x30] sm:$0xf]
      %v188 = vld [vmem:[%s166 + $0x34] sm:$0xf]
      %v189 = vld [vmem:[%s166 + $0x38] sm:$0xf]
      %v190 = vld [vmem:[%s166 + $0x3c] sm:$0xf]
      %v191 = vld [vmem:[%s166 + $0x40] sm:$0xf]
      %v192 = vld [vmem:[%s166 + $0x44] sm:$0xf]
      %v193 = vld [vmem:[%s166 + $0x48] sm:$0xf]
      %v194 = vld [vmem:[%s166 + $0x4c] sm:$0xf]
      %v195 = vld [vmem:[%s166 + $0x50] sm:$0xf]
      %v196 = vld [vmem:[%s166 + $0x54] sm:$0xf]
      %v197 = vld [vmem:[%s166 + $0x58] sm:$0xf]
      %v198 = vld [vmem:[%s166 + $0x5c] sm:$0xf]
      %v199 = vld [vmem:[%s166 + $0x60] sm:$0xf]
      %v200 = vld [vmem:[%s166 + $0x64] sm:$0xf]
      %v201 = vld [vmem:[%s166 + $0x68] sm:$0xf]
      %v202 = vld [vmem:[%s166 + $0x6c] sm:$0xf]
      %v203 = vld [vmem:[%s166 + $0x70] sm:$0xf]
      %v204 = vld [vmem:[%s166 + $0x74] sm:$0xf]
      %v205 = vld [vmem:[%s166 + $0x78] sm:$0xf]
      %v206 = vld [vmem:[%s166 + $0x7c] sm:$0xf]
      %v207 = vld [vmem:[%s166 + $0x80] sm:$0xf]
      %v208 = vld [vmem:[%s166 + $0x84] sm:$0xf]
      %v209 = vld [vmem:[%s166 + $0x88] sm:$0xf]
      %v210 = vld [vmem:[%s166 + $0x8c] sm:$0xf]
      %v211 = vld [vmem:[%s166 + $0x90] sm:$0xf]
      %v212 = vld [vmem:[%s166 + $0x94] sm:$0xf]
      %v213 = vld [vmem:[%s166 + $0x98] sm:$0xf]
      %v214 = vld [vmem:[%s166 + $0x9c] sm:$0xf]
      %v215 = vld [vmem:[%s166 + $0xa0] sm:$0xf]
      %v216 = vld [vmem:[%s166 + $0xa4] sm:$0xf]
      %v217 = vld [vmem:[%s166 + $0xa8] sm:$0xf]
      %v218 = vld [vmem:[%s166 + $0xac] sm:$0xf]
      %v219 = vld [vmem:[%s166 + $0xb0] sm:$0xf]
      %v220 = vld [vmem:[%s166 + $0xb4] sm:$0xf]
      %v221 = vld [vmem:[%s166 + $0xb8] sm:$0xf]
      %v222 = vld [vmem:[%s166 + $0xbc] sm:$0xf]
      %v223 = vld [vmem:[%s166 + $0xc0] sm:$0xf]
      %v224 = vld [vmem:[%s166 + $0xc4] sm:$0xf]
      %v225 = vld [vmem:[%s166 + $0xc8] sm:$0xf]
      %v226 = vld [vmem:[%s166 + $0xcc] sm:$0xf]
      %v227 = vld [vmem:[%s166 + $0xd0] sm:$0xf]
      %v228 = vld [vmem:[%s166 + $0xd4] sm:$0xf]
      %v229 = vld [vmem:[%s166 + $0xd8] sm:$0xf]
      %v230 = vld [vmem:[%s1] sm:$0xf]
      %v231 = vld [vmem:[%s1 + $0x4] sm:$0xf]
      %v232 = vld [vmem:[%s1 + $0x8] sm:$0xf]
      %v233 = vld [vmem:[%s1 + $0xc] sm:$0xf]
      %v234 = vld [vmem:[%s1 + $0x10] sm:$0xf]
      %v235 = vld [vmem:[%s1 + $0x14] sm:$0xf]
      %v236 = vld [vmem:[%s1 + $0x18] sm:$0xf]
      %v237 = vld [vmem:[%s1 + $0x1c] sm:$0xf]
      %v238 = vld [vmem:[%s1 + $0x20] sm:$0xf]
      %v239 = vld [vmem:[%s1 + $0x24] sm:$0xf]
      %v240 = vld [vmem:[%s1 + $0x28] sm:$0xf]
      %v241 = vld [vmem:[%s1 + $0x2c] sm:$0xf]
      %v242 = vld [vmem:[%s1 + $0x30] sm:$0xf]
      %v243 = vld [vmem:[%s1 + $0x34] sm:$0xf]
      %v244 = vld [vmem:[%s1 + $0x38] sm:$0xf]
      %v245 = vld [vmem:[%s1 + $0x3c] sm:$0xf]
      %v246 = vld [vmem:[%s2] sm:$0x1]
      %v248 = vlaneseq
      %v249 = vshrl.u32 %v248, 7
      %v250 = vsub.s32 0, %v249
      %v251 = vrot.slane %v246, %v250
      %v308 = vunpack.c.l.b16 %v175
      %v309 = vunpack.c.l.b16 %v176
      %v310 = vunpack.c.l.b16 %v177
      %v311 = vunpack.c.l.b16 %v178
      %v312 = vunpack.c.l.b16 %v179
      %v313 = vunpack.c.l.b16 %v180
      %v314 = vunpack.c.l.b16 %v181
      %v315 = vunpack.c.l.b16 %v182
      %v316 = vunpack.c.l.b16 %v183
      %v317 = vunpack.c.l.b16 %v184
      %v318 = vunpack.c.l.b16 %v185
      %v319 = vunpack.c.l.b16 %v186
      %v320 = vunpack.c.l.b16 %v187
      %v321 = vunpack.c.l.b16 %v188
      %v322 = vunpack.c.l.b16 %v189
      %v323 = vunpack.c.l.b16 %v190
      %v324 = vunpack.c.l.b16 %v191
      %v325 = vunpack.c.l.b16 %v192
      %v326 = vunpack.c.l.b16 %v193
      %v327 = vunpack.c.l.b16 %v194
      %v328 = vunpack.c.l.b16 %v195
      %v329 = vunpack.c.l.b16 %v196
      %v330 = vunpack.c.l.b16 %v197
      %v331 = vunpack.c.l.b16 %v198
      %v332 = vunpack.c.l.b16 %v199
      %v333 = vunpack.c.l.b16 %v200
      %v334 = vunpack.c.l.b16 %v201
      %v335 = vunpack.c.l.b16 %v202
      %v336 = vunpack.c.l.b16 %v203
      %v337 = vunpack.c.l.b16 %v204
      %v338 = vunpack.c.l.b16 %v205
      %v339 = vunpack.c.l.b16 %v206
      %v340 = vunpack.c.l.b16 %v207
      %v341 = vunpack.c.l.b16 %v208
      %v342 = vunpack.c.l.b16 %v209
      %v343 = vunpack.c.l.b16 %v210
      %v344 = vunpack.c.l.b16 %v211
      %v345 = vunpack.c.l.b16 %v212
      %v346 = vunpack.c.l.b16 %v213
      %v347 = vunpack.c.l.b16 %v214
      %v348 = vunpack.c.l.b16 %v215
      %v349 = vunpack.c.l.b16 %v216
      %v350 = vunpack.c.l.b16 %v217
      %v351 = vunpack.c.l.b16 %v218
      %v352 = vunpack.c.l.b16 %v219
      %v353 = vunpack.c.l.b16 %v220
      %v354 = vunpack.c.l.b16 %v221
      %v355 = vunpack.c.l.b16 %v222
      %v356 = vunpack.c.l.b16 %v223
      %v357 = vunpack.c.l.b16 %v224
      %v358 = vunpack.c.l.b16 %v225
      %v359 = vunpack.c.l.b16 %v226
      %v360 = vunpack.c.l.b16 %v227
      %v361 = vunpack.c.l.b16 %v228
      %v362 = vunpack.c.l.b16 %v229
      %v363 = vpack.c.b16 %v309, %v308
      %v364 = vpack.c.b16 %v311, %v310
      %v365 = vpack.c.b16 %v313, %v312
      %v366 = vpack.c.b16 %v315, %v314
      %v367 = vpack.c.b16 %v317, %v316
      %v368 = vpack.c.b16 %v319, %v318
      %v369 = vpack.c.b16 %v321, %v320
      %v370 = vpack.c.b16 %v323, %v322
      %v371 = vpack.c.b16 %v325, %v324
      %v372 = vpack.c.b16 %v327, %v326
      %v373 = vpack.c.b16 %v329, %v328
      %v374 = vpack.c.b16 %v331, %v330
      %v375 = vpack.c.b16 %v333, %v332
      %v376 = vpack.c.b16 %v335, %v334
      %v377 = vpack.c.b16 %v337, %v336
      %v378 = vpack.c.b16 %v339, %v338
      %v379 = vpack.c.b16 %v341, %v340
      %v380 = vpack.c.b16 %v343, %v342
      %v381 = vpack.c.b16 %v345, %v344
      %v382 = vpack.c.b16 %v347, %v346
      %v383 = vpack.c.b16 %v349, %v348
      %v384 = vpack.c.b16 %v351, %v350
      %v385 = vpack.c.b16 %v353, %v352
      %v386 = vpack.c.b16 %v355, %v354
      %v387 = vpack.c.b16 %v357, %v356
      %v388 = vpack.c.b16 %v359, %v358
      %v389 = vpack.c.b16 %v361, %v360
      %v390 = vpack.c.b16 %v362, %v362
      %v435 = vunpack.c.l.b16 %v230
      %v436 = vunpack.c.l.b16 %v231
      %v437 = vunpack.c.l.b16 %v232
      %v438 = vunpack.c.l.b16 %v233
      %v439 = vunpack.c.l.b16 %v234
      %v440 = vunpack.c.l.b16 %v235
      %v441 = vunpack.c.l.b16 %v236
      %v442 = vunpack.c.l.b16 %v237
      %v443 = vunpack.c.l.b16 %v238
      %v444 = vunpack.c.l.b16 %v239
      %v445 = vunpack.c.l.b16 %v240
      %v446 = vunpack.c.l.b16 %v241
      %v447 = vunpack.c.l.b16 %v242
      %v448 = vunpack.c.l.b16 %v243
      %v449 = vunpack.c.l.b16 %v244
      %v450 = vunpack.c.l.b16 %v245
      %v451 = vpack.c.b16 %v436, %v435
      %v452 = vpack.c.b16 %v438, %v437
      %v453 = vpack.c.b16 %v440, %v439
      %v454 = vpack.c.b16 %v442, %v441
      %v455 = vpack.c.b16 %v444, %v443
      %v456 = vpack.c.b16 %v446, %v445
      %v457 = vpack.c.b16 %v448, %v447
      %v458 = vpack.c.b16 %v450, %v449
      %467 = vmatprep.subr.bf16.mxu0 0
      %468 = vmatpush1.bf16.msra.mxu0 %v451
      %469 = vmatprep.subr.bf16.mxu0 0
      %470 = vmatpush1.bf16.msra.mxu0 %v452
      %471 = vmatprep.subr.bf16.mxu0 0
      %472 = vmatpush1.bf16.msra.mxu0 %v453
      %473 = vmatprep.subr.bf16.mxu0 0
      %474 = vmatpush1.bf16.msra.mxu0 %v454
      %475 = vmatprep.subr.bf16.mxu0 0
      %476 = vmatpush1.bf16.msra.mxu0 %v455
      %477 = vmatprep.subr.bf16.mxu0 0
      %478 = vmatpush1.bf16.msra.mxu0 %v456
      %479 = vmatprep.subr.bf16.mxu0 0
      %480 = vmatpush1.bf16.msra.mxu0 %v457
      %481 = vmatprep.subr.bf16.mxu0 0
      %482 = vmatpush1.bf16.msra.mxu0 %v458
      %483 = vmatprep.subr.bf16.mxu0 0
      %484 = vmatpush1.bf16.msra.mxu0 0
      %485 = vmatprep.subr.bf16.mxu0 0
      %486 = vmatpush1.bf16.msra.mxu0 0
      %487 = vmatprep.subr.bf16.mxu0 0
      %488 = vmatpush1.bf16.msra.mxu0 0
      %489 = vmatprep.subr.bf16.mxu0 0
      %490 = vmatpush1.bf16.msra.mxu0 0
      %491 = vmatprep.subr.bf16.mxu0 0
      %492 = vmatpush1.bf16.msra.mxu0 0
      %493 = vmatprep.subr.bf16.mxu0 0
      %494 = vmatpush1.bf16.msra.mxu0 0
      %495 = vmatprep.subr.bf16.mxu0 0
      %496 = vmatpush1.bf16.msra.mxu0 0
      %497 = vmatprep.subr.bf16.mxu0 0
      %498 = vmatpush1.bf16.msra.mxu0 0
      %499 = vmatprep.mubr.bf16.mxu0 0
      %500 = vmatmul.mubr.bf16.gmra.mrb[0].mxu0 %v363
      %v501 = vpop.f32.mrb[0].mxu0
      %v502 = vadd.f32 %v251, %v501
      %v503 = vpop.f32.mrb[0].mxu0
      %v504 = vpop.f32.mrb[0].mxu0
      %v505 = vadd.f32 %v251, %v504
      %v506 = vpop.f32.mrb[0].mxu0
      %507 = vmatprep.mubr.bf16.mxu0 0
      %508 = vmatmul.mubr.bf16.gmra.mrb[0].mxu0 %v364
      %v509 = vpop.f32.mrb[0].mxu0
      %v510 = vadd.f32 %v251, %v509
      %v511 = vpop.f32.mrb[0].mxu0
      %v512 = vpop.f32.mrb[0].mxu0
      %v513 = vadd.f32 %v251, %v512
      %v514 = vpop.f32.mrb[0].mxu0
      %515 = vmatprep.mubr.bf16.mxu0 0
      %516 = vmatmul.mubr.bf16.gmra.mrb[0].mxu0 %v365
      %v517 = vpop.f32.mrb[0].mxu0
      %v518 = vadd.f32 %v251, %v517
      %v519 = vpop.f32.mrb[0].mxu0
      %v520 = vpop.f32.mrb[0].mxu0
      %v521 = vadd.f32 %v251, %v520
      %v522 = vpop.f32.mrb[0].mxu0
      %523 = vmatprep.mubr.bf16.mxu0 0
      %524 = vmatmul.mubr.bf16.gmra.mrb[0].mxu0 %v366
      %v525 = vpop.f32.mrb[0].mxu0
      %v526 = vadd.f32 %v251, %v525
      %v527 = vpop.f32.mrb[0].mxu0
      %v528 = vpop.f32.mrb[0].mxu0
      %v529 = vadd.f32 %v251, %v528
      %v530 = vpop.f32.mrb[0].mxu0
      %531 = vmatprep.mubr.bf16.mxu0 0
      %532 = vmatmul.mubr.bf16.gmra.mrb[0].mxu0 %v367
      %v533 = vpop.f32.mrb[0].mxu0
      %v534 = vadd.f32 %v251, %v533
      %v535 = vpop.f32.mrb[0].mxu0
      %v536 = vpop.f32.mrb[0].mxu0
      %v537 = vadd.f32 %v251, %v536
      %v538 = vpop.f32.mrb[0].mxu0
      %539 = vmatprep.mubr.bf16.mxu0 0
      %540 = vmatmul.mubr.bf16.gmra.mrb[0].mxu0 %v368
      %v541 = vpop.f32.mrb[0].mxu0
      %v542 = vadd.f32 %v251, %v541
      %v543 = vpop.f32.mrb[0].mxu0
      %v544 = vpop.f32.mrb[0].mxu0
      %v545 = vadd.f32 %v251, %v544
      %v546 = vpop.f32.mrb[0].mxu0
      %547 = vmatprep.mubr.bf16.mxu0 0
      %548 = vmatmul.mubr.bf16.gmra.mrb[0].mxu0 %v369
      %v549 = vpop.f32.mrb[0].mxu0
      %v550 = vadd.f32 %v251, %v549
      %v551 = vpop.f32.mrb[0].mxu0
      %v552 = vpop.f32.mrb[0].mxu0
      %v553 = vadd.f32 %v251, %v552
      %v554 = vpop.f32.mrb[0].mxu0
      %555 = vmatprep.mubr.bf16.mxu0 0
      %556 = vmatmul.mubr.bf16.gmra.mrb[0].mxu0 %v370
      %v557 = vpop.f32.mrb[0].mxu0
      %v558 = vadd.f32 %v251, %v557
      %v559 = vpop.f32.mrb[0].mxu0
      %v560 = vpop.f32.mrb[0].mxu0
      %v561 = vadd.f32 %v251, %v560
      %v562 = vpop.f32.mrb[0].mxu0
      %563 = vmatprep.mubr.bf16.mxu0 0
      %564 = vmatmul.mubr.bf16.gmra.mrb[0].mxu0 %v371
      %v565 = vpop.f32.mrb[0].mxu0
      %v566 = vadd.f32 %v251, %v565
      %v567 = vpop.f32.mrb[0].mxu0
      %v568 = vpop.f32.mrb[0].mxu0
      %v569 = vadd.f32 %v251, %v568
      %v570 = vpop.f32.mrb[0].mxu0
      %571 = vmatprep.mubr.bf16.mxu0 0
      %572 = vmatmul.mubr.bf16.gmra.mrb[0].mxu0 %v372
      %v573 = vpop.f32.mrb[0].mxu0
      %v574 = vadd.f32 %v251, %v573
      %v575 = vpop.f32.mrb[0].mxu0
      %v576 = vpop.f32.mrb[0].mxu0
      %v577 = vadd.f32 %v251, %v576
      %v578 = vpop.f32.mrb[0].mxu0
      %579 = vmatprep.mubr.bf16.mxu0 0
      %580 = vmatmul.mubr.bf16.gmra.mrb[0].mxu0 %v373
      %v581 = vpop.f32.mrb[0].mxu0
      %v582 = vadd.f32 %v251, %v581
      %v583 = vpop.f32.mrb[0].mxu0
      %v584 = vpop.f32.mrb[0].mxu0
      %v585 = vadd.f32 %v251, %v584
      %v586 = vpop.f32.mrb[0].mxu0
      %587 = vmatprep.mubr.bf16.mxu0 0
      %588 = vmatmul.mubr.bf16.gmra.mrb[0].mxu0 %v374
      %v589 = vpop.f32.mrb[0].mxu0
      %v590 = vadd.f32 %v251, %v589
      %v591 = vpop.f32.mrb[0].mxu0
      %v592 = vpop.f32.mrb[0].mxu0
      %v593 = vadd.f32 %v251, %v592
      %v594 = vpop.f32.mrb[0].mxu0
      %595 = vmatprep.mubr.bf16.mxu0 0
      %596 = vmatmul.mubr.bf16.gmra.mrb[0].mxu0 %v375
      %v597 = vpop.f32.mrb[0].mxu0
      %v598 = vadd.f32 %v251, %v597
      %v599 = vpop.f32.mrb[0].mxu0
      %v600 = vpop.f32.mrb[0].mxu0
      %v601 = vadd.f32 %v251, %v600
      %v602 = vpop.f32.mrb[0].mxu0
      %603 = vmatprep.mubr.bf16.mxu0 0
      %604 = vmatmul.mubr.bf16.gmra.mrb[0].mxu0 %v376
      %v605 = vpop.f32.mrb[0].mxu0
      %v606 = vadd.f32 %v251, %v605
      %v607 = vpop.f32.mrb[0].mxu0
      %v608 = vpop.f32.mrb[0].mxu0
      %v609 = vadd.f32 %v251, %v608
      %v610 = vpop.f32.mrb[0].mxu0
      %611 = vmatprep.mubr.bf16.mxu0 0
      %612 = vmatmul.mubr.bf16.gmra.mrb[0].mxu0 %v377
      %v613 = vpop.f32.mrb[0].mxu0
      %v614 = vadd.f32 %v251, %v613
      %v615 = vpop.f32.mrb[0].mxu0
      %v616 = vpop.f32.mrb[0].mxu0
      %v617 = vadd.f32 %v251, %v616
      %v618 = vpop.f32.mrb[0].mxu0
      %619 = vmatprep.mubr.bf16.mxu0 0
      %620 = vmatmul.mubr.bf16.gmra.mrb[0].mxu0 %v378
      %v621 = vpop.f32.mrb[0].mxu0
      %v622 = vadd.f32 %v251, %v621
      %v623 = vpop.f32.mrb[0].mxu0
      %v624 = vpop.f32.mrb[0].mxu0
      %v625 = vadd.f32 %v251, %v624
      %v626 = vpop.f32.mrb[0].mxu0
      %627 = vmatprep.mubr.bf16.mxu0 0
      %628 = vmatmul.mubr.bf16.gmra.mrb[0].mxu0 %v379
      %v629 = vpop.f32.mrb[0].mxu0
      %v630 = vadd.f32 %v251, %v629
      %v631 = vpop.f32.mrb[0].mxu0
      %v632 = vpop.f32.mrb[0].mxu0
      %v633 = vadd.f32 %v251, %v632
      %v634 = vpop.f32.mrb[0].mxu0
      %635 = vmatprep.mubr.bf16.mxu0 0
      %636 = vmatmul.mubr.bf16.gmra.mrb[0].mxu0 %v380
      %v637 = vpop.f32.mrb[0].mxu0
      %v638 = vadd.f32 %v251, %v637
      %v639 = vpop.f32.mrb[0].mxu0
      %v640 = vpop.f32.mrb[0].mxu0
      %v641 = vadd.f32 %v251, %v640
      %v642 = vpop.f32.mrb[0].mxu0
      %643 = vmatprep.mubr.bf16.mxu0 0
      %644 = vmatmul.mubr.bf16.gmra.mrb[0].mxu0 %v381
      %v645 = vpop.f32.mrb[0].mxu0
      %v646 = vadd.f32 %v251, %v645
      %v647 = vpop.f32.mrb[0].mxu0
      %v648 = vpop.f32.mrb[0].mxu0
      %v649 = vadd.f32 %v251, %v648
      %v650 = vpop.f32.mrb[0].mxu0
      %651 = vmatprep.mubr.bf16.mxu0 0
      %652 = vmatmul.mubr.bf16.gmra.mrb[0].mxu0 %v382
      %v653 = vpop.f32.mrb[0].mxu0
      %v654 = vadd.f32 %v251, %v653
      %v655 = vpop.f32.mrb[0].mxu0
      %v656 = vpop.f32.mrb[0].mxu0
      %v657 = vadd.f32 %v251, %v656
      %v658 = vpop.f32.mrb[0].mxu0
      %659 = vmatprep.mubr.bf16.mxu0 0
      %660 = vmatmul.mubr.bf16.gmra.mrb[0].mxu0 %v383
      %v661 = vpop.f32.mrb[0].mxu0
      %v662 = vadd.f32 %v251, %v661
      %v663 = vpop.f32.mrb[0].mxu0
      %v664 = vpop.f32.mrb[0].mxu0
      %v665 = vadd.f32 %v251, %v664
      %v666 = vpop.f32.mrb[0].mxu0
      %667 = vmatprep.mubr.bf16.mxu0 0
      %668 = vmatmul.mubr.bf16.gmra.mrb[0].mxu0 %v384
      %v669 = vpop.f32.mrb[0].mxu0
      %v670 = vadd.f32 %v251, %v669
      %v671 = vpop.f32.mrb[0].mxu0
      %v672 = vpop.f32.mrb[0].mxu0
      %v673 = vadd.f32 %v251, %v672
      %v674 = vpop.f32.mrb[0].mxu0
      %675 = vmatprep.mubr.bf16.mxu0 0
      %676 = vmatmul.mubr.bf16.gmra.mrb[0].mxu0 %v385
      %v677 = vpop.f32.mrb[0].mxu0
      %v678 = vadd.f32 %v251, %v677
      %v679 = vpop.f32.mrb[0].mxu0
      %v680 = vpop.f32.mrb[0].mxu0
      %v681 = vadd.f32 %v251, %v680
      %v682 = vpop.f32.mrb[0].mxu0
      %683 = vmatprep.mubr.bf16.mxu0 0
      %684 = vmatmul.mubr.bf16.gmra.mrb[0].mxu0 %v386
      %v685 = vpop.f32.mrb[0].mxu0
      %v686 = vadd.f32 %v251, %v685
      %v687 = vpop.f32.mrb[0].mxu0
      %v688 = vpop.f32.mrb[0].mxu0
      %v689 = vadd.f32 %v251, %v688
      %v690 = vpop.f32.mrb[0].mxu0
      %691 = vmatprep.mubr.bf16.mxu0 0
      %692 = vmatmul.mubr.bf16.gmra.mrb[0].mxu0 %v387
      %v693 = vpop.f32.mrb[0].mxu0
      %v694 = vadd.f32 %v251, %v693
      %v695 = vpop.f32.mrb[0].mxu0
      %v696 = vpop.f32.mrb[0].mxu0
      %v697 = vadd.f32 %v251, %v696
      %v698 = vpop.f32.mrb[0].mxu0
      %699 = vmatprep.mubr.bf16.mxu0 0
      %700 = vmatmul.mubr.bf16.gmra.mrb[0].mxu0 %v388
      %v701 = vpop.f32.mrb[0].mxu0
      %v702 = vadd.f32 %v251, %v701
      %v703 = vpop.f32.mrb[0].mxu0
      %v704 = vpop.f32.mrb[0].mxu0
      %v705 = vadd.f32 %v251, %v704
      %v706 = vpop.f32.mrb[0].mxu0
      %707 = vmatprep.mubr.bf16.mxu0 0
      %708 = vmatmul.mubr.bf16.gmra.mrb[0].mxu0 %v389
      %v709 = vpop.f32.mrb[0].mxu0
      %v710 = vadd.f32 %v251, %v709
      %v711 = vpop.f32.mrb[0].mxu0
      %v712 = vpop.f32.mrb[0].mxu0
      %v713 = vadd.f32 %v251, %v712
      %v714 = vpop.f32.mrb[0].mxu0
      %715 = vmatprep.mubr.bf16.mxu0 0
      %716 = vmatmul.mubr.bf16.gmra.mrb[0].mxu0 %v390
      %v717 = vpop.f32.mrb[0].mxu0
      %v718 = vadd.f32 %v251, %v717
      %v719 = vpop.f32.mrb[0].mxu0
      %v720 = vpop.f32.mrb[0].mxu0
      %v721 = vpop.f32.mrb[0].mxu0
      %722 = vdwg.mxu0
      %v723 = vxor.u32 %v502, 2147483648
      %v724 = vxor.u32 %v505, 2147483648
      %v725 = vxor.u32 %v510, 2147483648
      %v726 = vxor.u32 %v513, 2147483648
      %v727 = vxor.u32 %v518, 2147483648
      %v728 = vxor.u32 %v521, 2147483648
      %v729 = vxor.u32 %v526, 2147483648
      %v730 = vxor.u32 %v529, 2147483648
      %v731 = vxor.u32 %v534, 2147483648
      %v732 = vxor.u32 %v537, 2147483648
      %v733 = vxor.u32 %v542, 2147483648
      %v734 = vxor.u32 %v545, 2147483648
      %v735 = vxor.u32 %v550, 2147483648
      %v736 = vxor.u32 %v553, 2147483648
      %v737 = vxor.u32 %v558, 2147483648
      %v738 = vxor.u32 %v561, 2147483648
      %v739 = vxor.u32 %v566, 2147483648
      %v740 = vxor.u32 %v569, 2147483648
      %v741 = vxor.u32 %v574, 2147483648
      %v742 = vxor.u32 %v577, 2147483648
      %v743 = vxor.u32 %v582, 2147483648
      %v744 = vxor.u32 %v585, 2147483648
      %v745 = vxor.u32 %v590, 2147483648
      %v746 = vxor.u32 %v593, 2147483648
      %v747 = vxor.u32 %v598, 2147483648
      %v748 = vxor.u32 %v601, 2147483648
      %v749 = vxor.u32 %v606, 2147483648
      %v750 = vxor.u32 %v609, 2147483648
      %v751 = vxor.u32 %v614, 2147483648
      %v752 = vxor.u32 %v617, 2147483648
      %v753 = vxor.u32 %v622, 2147483648
      %v754 = vxor.u32 %v625, 2147483648
      %v755 = vxor.u32 %v630, 2147483648
      %v756 = vxor.u32 %v633, 2147483648
      %v757 = vxor.u32 %v638, 2147483648
      %v758 = vxor.u32 %v641, 2147483648
      %v759 = vxor.u32 %v646, 2147483648
      %v760 = vxor.u32 %v649, 2147483648
      %v761 = vxor.u32 %v654, 2147483648
      %v762 = vxor.u32 %v657, 2147483648
      %v763 = vxor.u32 %v662, 2147483648
      %v764 = vxor.u32 %v665, 2147483648
      %v765 = vxor.u32 %v670, 2147483648
      %v766 = vxor.u32 %v673, 2147483648
      %v767 = vxor.u32 %v678, 2147483648
      %v768 = vxor.u32 %v681, 2147483648
      %v769 = vxor.u32 %v686, 2147483648
      %v770 = vxor.u32 %v689, 2147483648
      %v771 = vxor.u32 %v694, 2147483648
      %v772 = vxor.u32 %v697, 2147483648
      %v773 = vxor.u32 %v702, 2147483648
      %v774 = vxor.u32 %v705, 2147483648
      %v775 = vxor.u32 %v710, 2147483648
      %v776 = vxor.u32 %v713, 2147483648
      %v777 = vxor.u32 %v718, 2147483648
      %v778 = vmul.f32 %v723, 1.442695
      %v779 = vpow.pop %v778
      %v780 = vmul.f32 %v724, 1.442695
      %v781 = vpow.pop %v780
      %v782 = vmul.f32 %v725, 1.442695
      %v783 = vpow.pop %v782
      %v784 = vmul.f32 %v726, 1.442695
      %v785 = vpow.pop %v784
      %v786 = vmul.f32 %v727, 1.442695
      %v787 = vpow.pop %v786
      %v788 = vmul.f32 %v728, 1.442695
      %v789 = vpow.pop %v788
      %v790 = vmul.f32 %v729, 1.442695
      %v791 = vpow.pop %v790
      %v792 = vmul.f32 %v730, 1.442695
      %v793 = vpow.pop %v792
      %v794 = vmul.f32 %v731, 1.442695
      %v795 = vpow.pop %v794
      %v796 = vmul.f32 %v732, 1.442695
      %v797 = vpow.pop %v796
      %v798 = vmul.f32 %v733, 1.442695
      %v799 = vpow.pop %v798
      %v800 = vmul.f32 %v734, 1.442695
      %v801 = vpow.pop %v800
      %v802 = vmul.f32 %v735, 1.442695
      %v803 = vpow.pop %v802
      %v804 = vmul.f32 %v736, 1.442695
      %v805 = vpow.pop %v804
      %v806 = vmul.f32 %v737, 1.442695
      %v807 = vpow.pop %v806
      %v808 = vmul.f32 %v738, 1.442695
      %v809 = vpow.pop %v808
      %v810 = vmul.f32 %v739, 1.442695
      %v811 = vpow.pop %v810
      %v812 = vmul.f32 %v740, 1.442695
      %v813 = vpow.pop %v812
      %v814 = vmul.f32 %v741, 1.442695
      %v815 = vpow.pop %v814
      %v816 = vmul.f32 %v742, 1.442695
      %v817 = vpow.pop %v816
      %v818 = vmul.f32 %v743, 1.442695
      %v819 = vpow.pop %v818
      %v820 = vmul.f32 %v744, 1.442695
      %v821 = vpow.pop %v820
      %v822 = vmul.f32 %v745, 1.442695
      %v823 = vpow.pop %v822
      %v824 = vmul.f32 %v746, 1.442695
      %v825 = vpow.pop %v824
      %v826 = vmul.f32 %v747, 1.442695
      %v827 = vpow.pop %v826
      %v828 = vmul.f32 %v748, 1.442695
      %v829 = vpow.pop %v828
      %v830 = vmul.f32 %v749, 1.442695
      %v831 = vpow.pop %v830
      %v832 = vmul.f32 %v750, 1.442695
      %v833 = vpow.pop %v832
      %v834 = vmul.f32 %v751, 1.442695
      %v835 = vpow.pop %v834
      %v836 = vmul.f32 %v752, 1.442695
      %v837 = vpow.pop %v836
      %v838 = vmul.f32 %v753, 1.442695
      %v839 = vpow.pop %v838
      %v840 = vmul.f32 %v754, 1.442695
      %v841 = vpow.pop %v840
      %v842 = vmul.f32 %v755, 1.442695
      %v843 = vpow.pop %v842
      %v844 = vmul.f32 %v756, 1.442695
      %v845 = vpow.pop %v844
      %v846 = vmul.f32 %v757, 1.442695
      %v847 = vpow.pop %v846
      %v848 = vmul.f32 %v758, 1.442695
      %v849 = vpow.pop %v848
      %v850 = vmul.f32 %v759, 1.442695
      %v851 = vpow.pop %v850
      %v852 = vmul.f32 %v760, 1.442695
      %v853 = vpow.pop %v852
      %v854 = vmul.f32 %v761, 1.442695
      %v855 = vpow.pop %v854
      %v856 = vmul.f32 %v762, 1.442695
      %v857 = vpow.pop %v856
      %v858 = vmul.f32 %v763, 1.442695
      %v859 = vpow.pop %v858
      %v860 = vmul.f32 %v764, 1.442695
      %v861 = vpow.pop %v860
      %v862 = vmul.f32 %v765, 1.442695
      %v863 = vpow.pop %v862
      %v864 = vmul.f32 %v766, 1.442695
      %v865 = vpow.pop %v864
      %v866 = vmul.f32 %v767, 1.442695
      %v867 = vpow.pop %v866
      %v868 = vmul.f32 %v768, 1.442695
      %v869 = vpow.pop %v868
      %v870 = vmul.f32 %v769, 1.442695
      %v871 = vpow.pop %v870
      %v872 = vmul.f32 %v770, 1.442695
      %v873 = vpow.pop %v872
      %v874 = vmul.f32 %v771, 1.442695
      %v875 = vpow.pop %v874
      %v876 = vmul.f32 %v772, 1.442695
      %v877 = vpow.pop %v876
      %v878 = vmul.f32 %v773, 1.442695
      %v879 = vpow.pop %v878
      %v880 = vmul.f32 %v774, 1.442695
      %v881 = vpow.pop %v880
      %v882 = vmul.f32 %v775, 1.442695
      %v883 = vpow.pop %v882
      %v884 = vmul.f32 %v776, 1.442695
      %v885 = vpow.pop %v884
      %v886 = vmul.f32 %v777, 1.442695
      %v887 = vpow.pop %v886
      %v888 = vadd.f32 %v779, 1.0
      %v889 = vadd.f32 %v781, 1.0
      %v890 = vadd.f32 %v783, 1.0
      %v891 = vadd.f32 %v785, 1.0
      %v892 = vadd.f32 %v787, 1.0
      %v893 = vadd.f32 %v789, 1.0
      %v894 = vadd.f32 %v791, 1.0
      %v895 = vadd.f32 %v793, 1.0
      %v896 = vadd.f32 %v795, 1.0
      %v897 = vadd.f32 %v797, 1.0
      %v898 = vadd.f32 %v799, 1.0
      %v899 = vadd.f32 %v801, 1.0
      %v900 = vadd.f32 %v803, 1.0
      %v901 = vadd.f32 %v805, 1.0
      %v902 = vadd.f32 %v807, 1.0
      %v903 = vadd.f32 %v809, 1.0
      %v904 = vadd.f32 %v811, 1.0
      %v905 = vadd.f32 %v813, 1.0
      %v906 = vadd.f32 %v815, 1.0
      %v907 = vadd.f32 %v817, 1.0
      %v908 = vadd.f32 %v819, 1.0
      %v909 = vadd.f32 %v821, 1.0
      %v910 = vadd.f32 %v823, 1.0
      %v911 = vadd.f32 %v825, 1.0
      %v912 = vadd.f32 %v827, 1.0
      %v913 = vadd.f32 %v829, 1.0
      %v914 = vadd.f32 %v831, 1.0
      %v915 = vadd.f32 %v833, 1.0
      %v916 = vadd.f32 %v835, 1.0
      %v917 = vadd.f32 %v837, 1.0
      %v918 = vadd.f32 %v839, 1.0
      %v919 = vadd.f32 %v841, 1.0
      %v920 = vadd.f32 %v843, 1.0
      %v921 = vadd.f32 %v845, 1.0
      %v922 = vadd.f32 %v847, 1.0
      %v923 = vadd.f32 %v849, 1.0
      %v924 = vadd.f32 %v851, 1.0
      %v925 = vadd.f32 %v853, 1.0
      %v926 = vadd.f32 %v855, 1.0
      %v927 = vadd.f32 %v857, 1.0
      %v928 = vadd.f32 %v859, 1.0
      %v929 = vadd.f32 %v861, 1.0
      %v930 = vadd.f32 %v863, 1.0
      %v931 = vadd.f32 %v865, 1.0
      %v932 = vadd.f32 %v867, 1.0
      %v933 = vadd.f32 %v869, 1.0
      %v934 = vadd.f32 %v871, 1.0
      %v935 = vadd.f32 %v873, 1.0
      %v936 = vadd.f32 %v875, 1.0
      %v937 = vadd.f32 %v877, 1.0
      %v938 = vadd.f32 %v879, 1.0
      %v939 = vadd.f32 %v881, 1.0
      %v940 = vadd.f32 %v883, 1.0
      %v941 = vadd.f32 %v885, 1.0
      %v942 = vadd.f32 %v887, 1.0
      %v943 = vrcp.pop %v888
      %v944 = vmul.f32 1.0, %v943
      %v945 = vrcp.pop %v889
      %v946 = vmul.f32 1.0, %v945
      %v947 = vrcp.pop %v890
      %v948 = vmul.f32 1.0, %v947
      %v949 = vrcp.pop %v891
      %v950 = vmul.f32 1.0, %v949
      %v951 = vrcp.pop %v892
      %v952 = vmul.f32 1.0, %v951
      %v953 = vrcp.pop %v893
      %v954 = vmul.f32 1.0, %v953
      %v955 = vrcp.pop %v894
      %v956 = vmul.f32 1.0, %v955
      %v957 = vrcp.pop %v895
      %v958 = vmul.f32 1.0, %v957
      %v959 = vrcp.pop %v896
      %v960 = vmul.f32 1.0, %v959
      %v961 = vrcp.pop %v897
      %v962 = vmul.f32 1.0, %v961
      %v963 = vrcp.pop %v898
      %v964 = vmul.f32 1.0, %v963
      %v965 = vrcp.pop %v899
      %v966 = vmul.f32 1.0, %v965
      %v967 = vrcp.pop %v900
      %v968 = vmul.f32 1.0, %v967
      %v969 = vrcp.pop %v901
      %v970 = vmul.f32 1.0, %v969
      %v971 = vrcp.pop %v902
      %v972 = vmul.f32 1.0, %v971
      %v973 = vrcp.pop %v903
      %v974 = vmul.f32 1.0, %v973
      %v975 = vrcp.pop %v904
      %v976 = vmul.f32 1.0, %v975
      %v977 = vrcp.pop %v905
      %v978 = vmul.f32 1.0, %v977
      %v979 = vrcp.pop %v906
      %v980 = vmul.f32 1.0, %v979
      %v981 = vrcp.pop %v907
      %v982 = vmul.f32 1.0, %v981
      %v983 = vrcp.pop %v908
      %v984 = vmul.f32 1.0, %v983
      %v985 = vrcp.pop %v909
      %v986 = vmul.f32 1.0, %v985
      %v987 = vrcp.pop %v910
      %v988 = vmul.f32 1.0, %v987
      %v989 = vrcp.pop %v911
      %v990 = vmul.f32 1.0, %v989
      %v991 = vrcp.pop %v912
      %v992 = vmul.f32 1.0, %v991
      %v993 = vrcp.pop %v913
      %v994 = vmul.f32 1.0, %v993
      %v995 = vrcp.pop %v914
      %v996 = vmul.f32 1.0, %v995
      %v997 = vrcp.pop %v915
      %v998 = vmul.f32 1.0, %v997
      %v999 = vrcp.pop %v916
      %v1000 = vmul.f32 1.0, %v999
      %v1001 = vrcp.pop %v917
      %v1002 = vmul.f32 1.0, %v1001
      %v1003 = vrcp.pop %v918
      %v1004 = vmul.f32 1.0, %v1003
      %v1005 = vrcp.pop %v919
      %v1006 = vmul.f32 1.0, %v1005
      %v1007 = vrcp.pop %v920
      %v1008 = vmul.f32 1.0, %v1007
      %v1009 = vrcp.pop %v921
      %v1010 = vmul.f32 1.0, %v1009
      %v1011 = vrcp.pop %v922
      %v1012 = vmul.f32 1.0, %v1011
      %v1013 = vrcp.pop %v923
      %v1014 = vmul.f32 1.0, %v1013
      %v1015 = vrcp.pop %v924
      %v1016 = vmul.f32 1.0, %v1015
      %v1017 = vrcp.pop %v925
      %v1018 = vmul.f32 1.0, %v1017
      %v1019 = vrcp.pop %v926
      %v1020 = vmul.f32 1.0, %v1019
      %v1021 = vrcp.pop %v927
      %v1022 = vmul.f32 1.0, %v1021
      %v1023 = vrcp.pop %v928
      %v1024 = vmul.f32 1.0, %v1023
      %v1025 = vrcp.pop %v929
      %v1026 = vmul.f32 1.0, %v1025
      %v1027 = vrcp.pop %v930
      %v1028 = vmul.f32 1.0, %v1027
      %v1029 = vrcp.pop %v931
      %v1030 = vmul.f32 1.0, %v1029
      %v1031 = vrcp.pop %v932
      %v1032 = vmul.f32 1.0, %v1031
      %v1033 = vrcp.pop %v933
      %v1034 = vmul.f32 1.0, %v1033
      %v1035 = vrcp.pop %v934
      %v1036 = vmul.f32 1.0, %v1035
      %v1037 = vrcp.pop %v935
      %v1038 = vmul.f32 1.0, %v1037
      %v1039 = vrcp.pop %v936
      %v1040 = vmul.f32 1.0, %v1039
      %v1041 = vrcp.pop %v937
      %v1042 = vmul.f32 1.0, %v1041
      %v1043 = vrcp.pop %v938
      %v1044 = vmul.f32 1.0, %v1043
      %v1045 = vrcp.pop %v939
      %v1046 = vmul.f32 1.0, %v1045
      %v1047 = vrcp.pop %v940
      %v1048 = vmul.f32 1.0, %v1047
      %v1049 = vrcp.pop %v941
      %v1050 = vmul.f32 1.0, %v1049
      %v1051 = vrcp.pop %v942
      %v1052 = vmul.f32 1.0, %v1051
      %1053 = vst [vmem:[%s172] sm:$0xff] %v944
      %1054 = vst [vmem:[%s172 + $0x8] sm:$0xff] %v946
      %1055 = vst [vmem:[%s172 + $0x10] sm:$0xff] %v948
      %1056 = vst [vmem:[%s172 + $0x18] sm:$0xff] %v950
      %1057 = vst [vmem:[%s172 + $0x20] sm:$0xff] %v952
      %1058 = vst [vmem:[%s172 + $0x28] sm:$0xff] %v954
      %1059 = vst [vmem:[%s172 + $0x30] sm:$0xff] %v956
      %1060 = vst [vmem:[%s172 + $0x38] sm:$0xff] %v958
      %1061 = vst [vmem:[%s172 + $0x40] sm:$0xff] %v960
      %1062 = vst [vmem:[%s172 + $0x48] sm:$0xff] %v962
      %1063 = vst [vmem:[%s172 + $0x50] sm:$0xff] %v964
      %1064 = vst [vmem:[%s172 + $0x58] sm:$0xff] %v966
      %1065 = vst [vmem:[%s172 + $0x60] sm:$0xff] %v968
      %1066 = vst [vmem:[%s172 + $0x68] sm:$0xff] %v970
      %1067 = vst [vmem:[%s172 + $0x70] sm:$0xff] %v972
      %1068 = vst [vmem:[%s172 + $0x78] sm:$0xff] %v974
      %1069 = vst [vmem:[%s172 + $0x80] sm:$0xff] %v976
      %1070 = vst [vmem:[%s172 + $0x88] sm:$0xff] %v978
      %1071 = vst [vmem:[%s172 + $0x90] sm:$0xff] %v980
      %1072 = vst [vmem:[%s172 + $0x98] sm:$0xff] %v982
      %1073 = vst [vmem:[%s172 + $0xa0] sm:$0xff] %v984
      %1074 = vst [vmem:[%s172 + $0xa8] sm:$0xff] %v986
      %1075 = vst [vmem:[%s172 + $0xb0] sm:$0xff] %v988
      %1076 = vst [vmem:[%s172 + $0xb8] sm:$0xff] %v990
      %1077 = vst [vmem:[%s172 + $0xc0] sm:$0xff] %v992
      %1078 = vst [vmem:[%s172 + $0xc8] sm:$0xff] %v994
      %1079 = vst [vmem:[%s172 + $0xd0] sm:$0xff] %v996
      %1080 = vst [vmem:[%s172 + $0xd8] sm:$0xff] %v998
      %1081 = vst [vmem:[%s172 + $0xe0] sm:$0xff] %v1000
      %1082 = vst [vmem:[%s172 + $0xe8] sm:$0xff] %v1002
      %1083 = vst [vmem:[%s172 + $0xf0] sm:$0xff] %v1004
      %1084 = vst [vmem:[%s172 + $0xf8] sm:$0xff] %v1006
      %1085 = vst [vmem:[%s172 + $0x100] sm:$0xff] %v1008
      %1086 = vst [vmem:[%s172 + $0x108] sm:$0xff] %v1010
      %1087 = vst [vmem:[%s172 + $0x110] sm:$0xff] %v1012
      %1088 = vst [vmem:[%s172 + $0x118] sm:$0xff] %v1014
      %1089 = vst [vmem:[%s172 + $0x120] sm:$0xff] %v1016
      %1090 = vst [vmem:[%s172 + $0x128] sm:$0xff] %v1018
      %1091 = vst [vmem:[%s172 + $0x130] sm:$0xff] %v1020
      %1092 = vst [vmem:[%s172 + $0x138] sm:$0xff] %v1022
      %1093 = vst [vmem:[%s172 + $0x140] sm:$0xff] %v1024
      %1094 = vst [vmem:[%s172 + $0x148] sm:$0xff] %v1026
      %1095 = vst [vmem:[%s172 + $0x150] sm:$0xff] %v1028
      %1096 = vst [vmem:[%s172 + $0x158] sm:$0xff] %v1030
      %1097 = vst [vmem:[%s172 + $0x160] sm:$0xff] %v1032
      %1098 = vst [vmem:[%s172 + $0x168] sm:$0xff] %v1034
      %1099 = vst [vmem:[%s172 + $0x170] sm:$0xff] %v1036
      %1100 = vst [vmem:[%s172 + $0x178] sm:$0xff] %v1038
      %1101 = vst [vmem:[%s172 + $0x180] sm:$0xff] %v1040
      %1102 = vst [vmem:[%s172 + $0x188] sm:$0xff] %v1042
      %1103 = vst [vmem:[%s172 + $0x190] sm:$0xff] %v1044
      %1104 = vst [vmem:[%s172 + $0x198] sm:$0xff] %v1046
      %1105 = vst [vmem:[%s172 + $0x1a0] sm:$0xff] %v1048
      %1106 = vst [vmem:[%s172 + $0x1a8] sm:$0xff] %v1050
      %1107 = vst [vmem:[%s172 + $0x1b0] sm:$0xff] %v1052
      %s1108 = smul.u32 55, %s14
      %p1109 = scmp.lt.s32.totalorder %s1108, 274
      %s1110 = scalar_select %p1109, %s1108, 274
      %s1111 = smul.addr %s1110, 8
      %s1112 = scalar_lea.vmem %s3, %s1111
      // Predicated region
      $region33: #{decoder_forward.5} parent=31 // pred_check
        %p1113 = pneg %p100
      $region34: #{decoder_forward.5} parent=31 // pred_check_branch
        %1115 = sbr.rel (%p1113) target = $region36
      $region35: #{decoder_forward.5} parent=31 // pred_region
        %s1116 = smul.u32 55, %s14
      $region36: #{decoder_forward.5} parent=31 // pred_fallthru
        _
    $region32: #{decoder_forward.5} parent=5 // pred_fallthru
      _
    %p1117 = scmp.le.s32.totalorder 2, %s9
    // Predicated region
    $region37: #{decoder_forward.5} parent=5 // pred_check
      %p1118 = pneg %p1117
    $region38: #{decoder_forward.5} parent=5 // pred_check_branch
      %1120 = sbr.rel (%p1118) target = $region40
    $region39: #{decoder_forward.5} parent=5 // pred_region
      %s1121 = ssub.s32 %s9, 2
      // Predicated region
      $region41: #{decoder_forward.5} parent=39 // pred_check
        %p1122 = pneg %p106
      $region42: #{decoder_forward.5} parent=39 // pred_check_branch
        %1124 = sbr.rel (%p1122) target = $region44
      $region43: #{decoder_forward.5} parent=39 // pred_region
        %s1125 = smul.u32 55, %s15
        %p1126 = scmp.lt.s32.totalorder %s1125, 274
        %s1127 = scalar_select %p1126, %s1125, 274
        %s1128 = smul.addr %s1127, 8
        %s1129 = scalar_lea.vmem %s3, %s1128
      $region44: #{decoder_forward.5} parent=39 // pred_fallthru
        _
    $region40: #{decoder_forward.5} parent=5 // pred_fallthru
      _
  $region6: #{decoder_forward.5} parent=0 // loop_footer
    %s13 = sadd.s32 1, %s9
  $region7: #{decoder_forward.5} parent=0 // loop_footer_branch
    %8 = sbr.rel target = $region3
  $region8: #{decoder_forward.5} parent=0 // loop_exit
    _

</llo_original>
